<compile_context>
chip_gen: v5e
topology: v5e:2x2
jax: 0.10.0
libtpu: 0.0.40
codegen_flags: <defaults>
</compile_context>

<pallas_src>
import functools

import jax
import jax.numpy as jnp
from jax.experimental import pallas as pl
from jax.experimental.pallas import tpu as pltpu  # noqa: F401  (TPU backend assumed)

# ----------------------------- model config ---------------------------------
BATCH = 2
IN_CH = 3
IMG = 32
PATCH = 16
NUM_PATCHES = (IMG // PATCH) ** 2          # 4
NTOK = NUM_PATCHES + 1                     # 5 (cls + patches)
BN = BATCH * NTOK                          # 10 tokens total
EMBED = 32
NUM_HEADS = 4
HEAD_DIM = EMBED // NUM_HEADS              # 8
DEPTH = 2
MLP_HIDDEN = 4 * EMBED                     # 128
NUM_CLASSES = 8
PATCH_DIM = IN_CH * PATCH * PATCH          # 768
EPS = 1e-6                                 # timm ViT LayerNorm eps
NEG_INF = -1e30                            # cross-batch attention mask value

LANES = 128
OUT_W = (DEPTH + 2) * EMBED                # packed output width (lane-dense)
assert OUT_W == LANES


def _align8(n):
  return (n + 7) & ~7


# ---- "narrow" (EMBED-wide) weight-slab row layout ----
NR_PATCH_W = 0                             # (PATCH_DIM, EMBED) patch embed W^T
NR_ADD     = NR_PATCH_W + PATCH_DIM        # (BN, EMBED) cls+pos+patch-bias term
NR_NORM_G  = _align8(NR_ADD + BN)
NR_NORM_B  = NR_NORM_G + 1
NR_HEAD_W  = _align8(NR_NORM_B + 1)        # (EMBED, EMBED) head W^T zero-padded cols
NR_HEAD_B  = NR_HEAD_W + EMBED
NR_BIAS    = _align8(NR_HEAD_B + 1)        # (BN, BN) block-diagonal attn mask
NR_BLOCKS  = _align8(NR_BIAS + BN)
# per-depth section offsets inside a BLOCK_ROWS chunk
BO_LN1_G, BO_LN1_B, BO_PB, BO_LN2_G, BO_LN2_B, BO_FC2_B = 0, 1, 2, 3, 4, 5
BO_PW    = 8                               # (EMBED, EMBED) attn proj W^T
BO_FC2_W = BO_PW + EMBED                   # (MLP_HIDDEN, EMBED) fc2 W^T
BLOCK_ROWS = _align8(BO_FC2_W + MLP_HIDDEN)
NARROW_ROWS = NR_BLOCKS + DEPTH * BLOCK_ROWS

# ---- "wide" (128-lane) weight-slab row layout (per depth) ----
WO_QKV   = 0                               # (EMBED, 3*EMBED) fused qkv W^T (q pre-scaled)
WO_BQKV  = WO_QKV + EMBED                  # (1, 3*EMBED)
WO_FC1_W = _align8(WO_BQKV + 1)            # (EMBED, MLP_HIDDEN)
WO_FC1_B = WO_FC1_W + EMBED                # (1, MLP_HIDDEN)
WIDE_ROWS = _align8(WO_FC1_B + 1)


# --------------------------- fused forward kernel ----------------------------
def _vitnet_fused_kernel(aug_ref, nar_ref, wide_ref, out_ref, *, depth, num_heads):
  f32 = jnp.float32
  bn = out_ref.shape[0]
  c = EMBED
  dh = c // num_heads

  def row(ref, r):                         # (1, width) view -> clean broadcast
    return ref[r:r + 1, :]

  def ln(v, g, b):
    # Fused-statistics LayerNorm: E[x] and E[x^2] are independent reductions.
    m1 = jnp.mean(v, axis=-1, keepdims=True)
    m2 = jnp.mean(v * v, axis=-1, keepdims=True)
    var = m2 - m1 * m1
    return (v - m1) * jax.lax.rsqrt(var + EPS) * g + b

  # Block-diagonal additive mask (baked constant in the slab, no per-call DMA).
  mask_bias = nar_ref[NR_BIAS:NR_BIAS + bn, 0:bn]              # (bn, bn)

  # Patch embed + cls prepend + pos embed collapsed into one matmul + add:
  # cls rows of `aug` are zero; `add` carries cls_token + pos_embed (+ patch bias).
  patch_wt = nar_ref[NR_PATCH_W:NR_PATCH_W + PATCH_DIM, :]
  add = nar_ref[NR_ADD:NR_ADD + bn, :]
  x = jnp.dot(aug_ref[...], patch_wt, preferred_element_type=f32) + add   # (bn, C)

  fmaps = []
  for d in range(depth):
    base = NR_BLOCKS + d * BLOCK_ROWS

    # ---------------- multi-head self attention ----------------
    xn = ln(x, row(nar_ref, base + BO_LN1_G), row(nar_ref, base + BO_LN1_B))
    wqkv = wide_ref[d, WO_QKV:WO_QKV + c, 0:3 * c]             # (C, 3C), q pre-scaled
    bqkv = wide_ref[d, WO_BQKV:WO_BQKV + 1, 0:3 * c]           # (1, 3C)
    qkv = jnp.dot(xn, wqkv, preferred_element_type=f32) + bqkv  # one fused QKV matmul

    heads = []
    for h in range(num_heads):
      qh = qkv[:, h * dh:(h + 1) * dh]                         # static lane slices
      kh = qkv[:, c + h * dh:c + (h + 1) * dh]
      vh = qkv[:, 2 * c + h * dh:2 * c + (h + 1) * dh]
      s = jax.lax.dot_general(qh, kh, (((1,), (1,)), ((), ())),
                              preferred_element_type=f32) + mask_bias
      m = jnp.max(s, axis=-1, keepdims=True)
      p = jnp.exp(s - m)
      p = p * pl.reciprocal(jnp.sum(p, axis=-1, keepdims=True), approx=True)
      heads.append(jnp.dot(p, vh, preferred_element_type=f32))  # (bn, dh)

    attn = jnp.concatenate(heads, axis=-1)                      # (bn, C)
    pw = nar_ref[base + BO_PW:base + BO_PW + c, :]              # (C, C)
    x = x + jnp.dot(attn, pw, preferred_element_type=f32) + row(nar_ref, base + BO_PB)

    # ----------------------------- MLP --------------------------
    yn = ln(x, row(nar_ref, base + BO_LN2_G), row(nar_ref, base + BO_LN2_B))
    fc1_w = wide_ref[d, WO_FC1_W:WO_FC1_W + c, :]               # (C, 4C)
    fc1_b = wide_ref[d, WO_FC1_B:WO_FC1_B + 1, :]
    h1 = jnp.dot(yn, fc1_w, preferred_element_type=f32) + fc1_b
    # TODO(synk): timm nn.GELU is the exact erf GELU; tanh approximation used
    # here for guaranteed Mosaic lowering (difference ~1e-3).
    h1 = jax.nn.gelu(h1, approximate=True)
    fc2_w = nar_ref[base + BO_FC2_W:base + BO_FC2_W + MLP_HIDDEN, :]   # (4C, C)
    x = x + jnp.dot(h1, fc2_w, preferred_element_type=f32) + row(nar_ref, base + BO_FC2_B)

    fmaps.append(x)                        # captured before final norm

  xf = ln(x, row(nar_ref, NR_NORM_G), row(nar_ref, NR_NORM_B))
  head_w = nar_ref[NR_HEAD_W:NR_HEAD_W + c, :]                  # cols >= NUM_CLASSES are zero
  logits = jnp.dot(xf, head_w, preferred_element_type=f32) + row(nar_ref, NR_HEAD_B)

  # Single lane-dense packed output: [fmap_0 | fmap_1 | allfeat | logits(pad)]
  out_ref[...] = jnp.concatenate(fmaps + [xf, logits], axis=-1).astype(out_ref.dtype)


# ----------------- one-time host-side weight packing (outside jit) -----------
def pack_params(params):
  """Pack all weights into two pre-transposed VMEM slabs. Call ONCE at init."""
  f32 = jnp.float32
  c = EMBED
  scale = HEAD_DIM ** -0.5

  narrow = jnp.zeros((NARROW_ROWS, EMBED), f32)
  narrow = narrow.at[NR_PATCH_W:NR_PATCH_W + PATCH_DIM].set(params["patch_w"].T)

  # cls-token prepend + pos-embed add + patch-embed bias folded into one term.
  add = jnp.broadcast_to(params["pos_embed"], (BATCH, NTOK, EMBED))
  add = add.at[:, 0, :].add(params["cls_token"][0, 0])
  add = add.at[:, 1:, :].add(params["patch_b"])
  narrow = narrow.at[NR_ADD:NR_ADD + BN].set(add.reshape(BN, EMBED).astype(f32))

  narrow = narrow.at[NR_NORM_G].set(params["norm_g"][0])
  narrow = narrow.at[NR_NORM_B].set(params["norm_b"][0])

  head_w = jnp.zeros((EMBED, EMBED), f32).at[:, :NUM_CLASSES].set(params["fc_w"].T)
  narrow = narrow.at[NR_HEAD_W:NR_HEAD_W + EMBED].set(head_w)
  narrow = narrow.at[NR_HEAD_B, :NUM_CLASSES].set(params["fc_b"][0])

  # Block-diagonal additive attention mask (shape-only constant).
  tok_batch = jnp.repeat(jnp.arange(BATCH), NTOK)
  bias = jnp.where(tok_batch[:, None] == tok_batch[None, :], 0.0, NEG_INF)
  narrow = narrow.at[NR_BIAS:NR_BIAS + BN, :BN].set(bias.astype(f32))

  wide = jnp.zeros((DEPTH, WIDE_ROWS, LANES), f32)
  for d, blk in enumerate(params["blocks"]):
    base = NR_BLOCKS + d * BLOCK_ROWS
    narrow = narrow.at[base + BO_LN1_G].set(blk["ln1_g"][0])
    narrow = narrow.at[base + BO_LN1_B].set(blk["ln1_b"][0])
    narrow = narrow.at[base + BO_PB].set(blk["proj_b"][0])
    narrow = narrow.at[base + BO_LN2_G].set(blk["ln2_g"][0])
    narrow = narrow.at[base + BO_LN2_B].set(blk["ln2_b"][0])
    narrow = narrow.at[base + BO_FC2_B].set(blk["fc2_b"][0])
    narrow = narrow.at[base + BO_PW:base + BO_PW + c].set(blk["proj_w"].T)
    narrow = narrow.at[base + BO_FC2_W:base + BO_FC2_W + MLP_HIDDEN].set(blk["fc2_w"].T)

    wqkv_t = blk["qkv_w"].T                       # (C, 3C): columns [q | k | v]
    wqkv_t = wqkv_t.at[:, :c].multiply(scale)     # fold attention scale into q
    bqkv = blk["qkv_b"].reshape(-1).at[:c].multiply(scale)
    wide = wide.at[d, WO_QKV:WO_QKV + c, 0:3 * c].set(wqkv_t)
    wide = wide.at[d, WO_BQKV, 0:3 * c].set(bqkv)
    wide = wide.at[d, WO_FC1_W:WO_FC1_W + c, :].set(blk["fc1_w"].T)
    wide = wide.at[d, WO_FC1_B, :].set(blk["fc1_b"][0])

  return {"narrow": narrow, "wide": wide}


# ------------------------------ full forward ---------------------------------
def vit_forward(x_img, packed):
  """ViTNet.forward: backbone_forward(x) + fc head on CLS features."""
  b, cin, hgt, wdt = x_img.shape
  p = PATCH
  nh, nw = hgt // p, wdt // p
  npatch = nh * nw
  ntok = npatch + 1
  bn = b * ntok
  assert (b, cin, npatch) == (BATCH, IN_CH, NUM_PATCHES)

  # Unfold NCHW into per-patch vectors in (C_in, ph, pw) order (Conv2d weight
  # flattening); a zero row per image in the cls slot lets the kernel fold the
  # cls prepend into the patch-embed matmul.
  patches = x_img.reshape(b, cin, nh, p, nw, p).transpose(0, 2, 4, 1, 3, 5)
  patches = patches.reshape(b, npatch, PATCH_DIM)
  aug = jnp.pad(patches, ((0, 0), (1, 0), (0, 0))).reshape(bn, PATCH_DIM)
  aug = aug.astype(jnp.float32)

  # TODO(synk): at real vit_base sizes the weights would need a depth-streamed
  # grid (per-block BlockSpecs) instead of full VMEM residency, esp. on v7x.
  packed_out = pl.pallas_call(
      functools.partial(_vitnet_fused_kernel, depth=DEPTH, num_heads=NUM_HEADS),
      out_shape=jax.ShapeDtypeStruct((bn, OUT_W), jnp.float32),
  )(aug, packed["narrow"], packed["wide"])

  fmaps = [packed_out[:, d * EMBED:(d + 1) * EMBED].reshape(b, ntok, EMBED)[:, 1:]
           for d in range(DEPTH)]
  allfeat = packed_out[:, DEPTH * EMBED:(DEPTH + 1) * EMBED].reshape(b, ntok, EMBED)
  logits = packed_out[:, (DEPTH + 1) * EMBED:(DEPTH + 1) * EMBED + NUM_CLASSES]
  logits = logits.reshape(b, ntok, NUM_CLASSES)[:, 0]

  return {
      "fmaps": fmaps,
      "features": allfeat[:, 0],
      "img_features": allfeat[:, 1:],
      "all_features": allfeat,
      "logits": logits,
  }


# --------------------------- deterministic params ----------------------------
def init_params(key):
  ks = jax.random.split(key, 4 + DEPTH)

  def nrm(k, shape, s=0.02):
    return jax.random.normal(k, shape, jnp.float32) * s

  params = {
      "patch_w": nrm(ks[0], (EMBED, PATCH_DIM)),
      "patch_b": jnp.zeros((1, EMBED), jnp.float32),
      "cls_token": nrm(ks[1], (1, 1, EMBED)),
      "pos_embed": nrm(ks[2], (1, NTOK, EMBED)),
      "norm_g": jnp.ones((1, EMBED), jnp.float32),
      "norm_b": jnp.zeros((1, EMBED), jnp.float32),
      "fc_w": nrm(ks[3], (NUM_CLASSES, EMBED)),
      "fc_b": jnp.zeros((1, NUM_CLASSES), jnp.float32),
      "blocks": [],
  }
  for d in range(DEPTH):
    kk = jax.random.split(ks[4 + d], 4)
    params["blocks"].append({
        "ln1_g": jnp.ones((1, EMBED), jnp.float32),
        "ln1_b": jnp.zeros((1, EMBED), jnp.float32),
        "qkv_w": nrm(kk[0], (3 * EMBED, EMBED)),
        "qkv_b": jnp.zeros((1, 3 * EMBED), jnp.float32),
        "proj_w": nrm(kk[1], (EMBED, EMBED)),
        "proj_b": jnp.zeros((1, EMBED), jnp.float32),
        "ln2_g": jnp.ones((1, EMBED), jnp.float32),
        "ln2_b": jnp.zeros((1, EMBED), jnp.float32),
        "fc1_w": nrm(kk[2], (MLP_HIDDEN, EMBED)),
        "fc1_b": jnp.zeros((1, MLP_HIDDEN), jnp.float32),
        "fc2_w": nrm(kk[3], (EMBED, MLP_HIDDEN)),
        "fc2_b": jnp.zeros((1, EMBED), jnp.float32),
    })
  return params


if __name__ == "__main__":
  key = jax.random.PRNGKey(0)
  pkey, xkey = jax.random.split(key)
  params = init_params(pkey)
  packed = pack_params(params)          # one-time packing, outside the jit path

  x = jax.random.normal(xkey, (BATCH, IN_CH, IMG, IMG), jnp.float32)  # NCHW

  fwd = jax.jit(vit_forward)
  out = fwd(x, packed)
  out = jax.block_until_ready(out)

  assert out["logits"].shape == (BATCH, NUM_CLASSES)
  assert out["features"].shape == (BATCH, EMBED)
  assert out["img_features"].shape == (BATCH, NUM_PATCHES, EMBED)
  assert out["all_features"].shape == (BATCH, NTOK, EMBED)
  assert len(out["fmaps"]) == DEPTH
  assert out["fmaps"][0].shape == (BATCH, NUM_PATCHES, EMBED)
  assert bool(jnp.all(jnp.isfinite(out["logits"])))

  print("KERNEL_OK")
</pallas_src>

<mosaic_0001>
module attributes {stable_mosaic.version = 11 : i64} {
  func.func @_vitnet_fused_kernel(%arg0: memref<10x768xf32, #tpu.memory_space<vmem>>, %arg1: memref<1184x32xf32, #tpu.memory_space<vmem>>, %arg2: memref<2x80x128xf32, #tpu.memory_space<vmem>>, %arg3: memref<10x128xf32, #tpu.memory_space<vmem>>) attributes {dimension_semantics = [], scalar_prefetch = 0 : i64, scratch_operands = 0 : i64, tpu.core_type = #tpu.core_type<tc>} {
    %c832 = arith.constant 832 : index
    %c0 = arith.constant 0 : index
    %0 = vector.load %arg1[%c832, %c0] : memref<1184x32xf32, #tpu.memory_space<vmem>>, vector<10x10xf32>
    %c0_0 = arith.constant 0 : index
    %c0_1 = arith.constant 0 : index
    %1 = vector.load %arg1[%c0_0, %c0_1] : memref<1184x32xf32, #tpu.memory_space<vmem>>, vector<768x32xf32>
    %c768 = arith.constant 768 : index
    %c0_2 = arith.constant 0 : index
    %2 = vector.load %arg1[%c768, %c0_2] : memref<1184x32xf32, #tpu.memory_space<vmem>>, vector<10x32xf32>
    %c0_3 = arith.constant 0 : index
    %c0_4 = arith.constant 0 : index
    %3 = vector.load %arg0[%c0_3, %c0_4] : memref<10x768xf32, #tpu.memory_space<vmem>>, vector<10x768xf32>
    %cst = arith.constant dense<0.000000e+00> : vector<10x32xf32>
    %4 = tpu.matmul %3, %1, %cst {dimension_numbers = #tpu.dot_dimension_numbers<[1], [0], [0], [1], [0, 0, 1, 1], [], []>} : vector<10x768xf32>, vector<768x32xf32>, vector<10x32xf32> -> vector<10x32xf32>
    %5 = arith.addf %4, %2 : vector<10x32xf32>
    %c848 = arith.constant 848 : index
    %c0_5 = arith.constant 0 : index
    %6 = vector.load %arg1[%c848, %c0_5] : memref<1184x32xf32, #tpu.memory_space<vmem>>, vector<1x32xf32>
    %c849 = arith.constant 849 : index
    %c0_6 = arith.constant 0 : index
    %7 = vector.load %arg1[%c849, %c0_6] : memref<1184x32xf32, #tpu.memory_space<vmem>>, vector<1x32xf32>
    %cst_7 = arith.constant dense<0.000000e+00> : vector<10xf32>
    %8 = vector.multi_reduction <add>, %5, %cst_7 [1] : vector<10x32xf32> to vector<10xf32>
    %9 = vector.shape_cast %8 : vector<10xf32> to vector<10x1xf32>
    %cst_8 = arith.constant 3.200000e+01 : f32
    %10 = vector.broadcast %cst_8 : f32 to vector<10x1xf32>
    %11 = arith.divf %9, %10 : vector<10x1xf32>
    %12 = arith.mulf %5, %5 : vector<10x32xf32>
    %cst_9 = arith.constant dense<0.000000e+00> : vector<10xf32>
    %13 = vector.multi_reduction <add>, %12, %cst_9 [1] : vector<10x32xf32> to vector<10xf32>
    %14 = vector.shape_cast %13 : vector<10xf32> to vector<10x1xf32>
    %cst_10 = arith.constant 3.200000e+01 : f32
    %15 = vector.broadcast %cst_10 : f32 to vector<10x1xf32>
    %16 = arith.divf %14, %15 : vector<10x1xf32>
    %17 = arith.mulf %11, %11 : vector<10x1xf32>
    %18 = arith.subf %16, %17 : vector<10x1xf32>
    %19 = vector.broadcast %11 : vector<10x1xf32> to vector<10x32xf32>
    %20 = arith.subf %5, %19 : vector<10x32xf32>
    %cst_11 = arith.constant 9.99999997E-7 : f32
    %21 = vector.broadcast %cst_11 : f32 to vector<10x1xf32>
    %22 = arith.addf %18, %21 : vector<10x1xf32>
    %23 = math.rsqrt %22 : vector<10x1xf32>
    %24 = vector.broadcast %23 : vector<10x1xf32> to vector<10x32xf32>
    %25 = arith.mulf %20, %24 : vector<10x32xf32>
    %26 = vector.broadcast %6 : vector<1x32xf32> to vector<10x32xf32>
    %27 = arith.mulf %25, %26 : vector<10x32xf32>
    %28 = vector.broadcast %7 : vector<1x32xf32> to vector<10x32xf32>
    %29 = arith.addf %27, %28 : vector<10x32xf32>
    %c0_12 = arith.constant 0 : index
    %c0_13 = arith.constant 0 : index
    %c0_14 = arith.constant 0 : index
    %30 = vector.load %arg2[%c0_12, %c0_13, %c0_14] : memref<2x80x128xf32, #tpu.memory_space<vmem>>, vector<1x32x96xf32>
    %31 = vector.shape_cast %30 : vector<1x32x96xf32> to vector<32x96xf32>
    %c0_15 = arith.constant 0 : index
    %c32 = arith.constant 32 : index
    %c0_16 = arith.constant 0 : index
    %32 = vector.load %arg2[%c0_15, %c32, %c0_16] : memref<2x80x128xf32, #tpu.memory_space<vmem>>, vector<1x1x96xf32>
    %33 = vector.shape_cast %32 : vector<1x1x96xf32> to vector<1x96xf32>
    %cst_17 = arith.constant dense<0.000000e+00> : vector<10x96xf32>
    %34 = tpu.matmul %29, %31, %cst_17 {dimension_numbers = #tpu.dot_dimension_numbers<[1], [0], [0], [1], [0, 0, 1, 1], [], []>} : vector<10x32xf32>, vector<32x96xf32>, vector<10x96xf32> -> vector<10x96xf32>
    %35 = vector.broadcast %33 : vector<1x96xf32> to vector<10x96xf32>
    %36 = arith.addf %34, %35 : vector<10x96xf32>
    %37 = vector.extract_strided_slice %36 {offsets = [0, 0], sizes = [10, 8], strides = [1, 1]} : vector<10x96xf32> to vector<10x8xf32>
    %38 = vector.extract_strided_slice %36 {offsets = [0, 32], sizes = [10, 8], strides = [1, 1]} : vector<10x96xf32> to vector<10x8xf32>
    %39 = vector.extract_strided_slice %36 {offsets = [0, 64], sizes = [10, 8], strides = [1, 1]} : vector<10x96xf32> to vector<10x8xf32>
    %cst_18 = arith.constant dense<0.000000e+00> : vector<10x10xf32>
    %40 = tpu.matmul %37, %38, %cst_18 {dimension_numbers = #tpu.dot_dimension_numbers<[1], [1], [0], [0], [0, 0, 1, 0], [], []>} : vector<10x8xf32>, vector<10x8xf32>, vector<10x10xf32> -> vector<10x10xf32>
    %41 = arith.addf %40, %0 : vector<10x10xf32>
    %cst_19 = arith.constant dense<0xFF800000> : vector<10xf32>
    %42 = vector.multi_reduction <maximumf>, %41, %cst_19 [1] : vector<10x10xf32> to vector<10xf32>
    %43 = vector.shape_cast %42 : vector<10xf32> to vector<10x1xf32>
    %44 = vector.broadcast %43 : vector<10x1xf32> to vector<10x10xf32>
    %45 = arith.subf %41, %44 : vector<10x10xf32>
    %46 = math.exp %45 : vector<10x10xf32>
    %cst_20 = arith.constant dense<0.000000e+00> : vector<10xf32>
    %47 = vector.multi_reduction <add>, %46, %cst_20 [1] : vector<10x10xf32> to vector<10xf32>
    %48 = vector.shape_cast %47 : vector<10xf32> to vector<10x1xf32>
    %49 = tpu.reciprocal %48 {approx = true} : vector<10x1xf32> -> vector<10x1xf32>
    %50 = vector.broadcast %49 : vector<10x1xf32> to vector<10x10xf32>
    %51 = arith.mulf %46, %50 : vector<10x10xf32>
    %cst_21 = arith.constant dense<0.000000e+00> : vector<10x8xf32>
    %52 = tpu.matmul %51, %39, %cst_21 {dimension_numbers = #tpu.dot_dimension_numbers<[1], [0], [0], [1], [0, 0, 1, 1], [], []>} : vector<10x10xf32>, vector<10x8xf32>, vector<10x8xf32> -> vector<10x8xf32>
    %53 = vector.extract_strided_slice %36 {offsets = [0, 8], sizes = [10, 8], strides = [1, 1]} : vector<10x96xf32> to vector<10x8xf32>
    %54 = vector.extract_strided_slice %36 {offsets = [0, 40], sizes = [10, 8], strides = [1, 1]} : vector<10x96xf32> to vector<10x8xf32>
    %55 = vector.extract_strided_slice %36 {offsets = [0, 72], sizes = [10, 8], strides = [1, 1]} : vector<10x96xf32> to vector<10x8xf32>
    %cst_22 = arith.constant dense<0.000000e+00> : vector<10x10xf32>
    %56 = tpu.matmul %53, %54, %cst_22 {dimension_numbers = #tpu.dot_dimension_numbers<[1], [1], [0], [0], [0, 0, 1, 0], [], []>} : vector<10x8xf32>, vector<10x8xf32>, vector<10x10xf32> -> vector<10x10xf32>
    %57 = arith.addf %56, %0 : vector<10x10xf32>
    %cst_23 = arith.constant dense<0xFF800000> : vector<10xf32>
    %58 = vector.multi_reduction <maximumf>, %57, %cst_23 [1] : vector<10x10xf32> to vector<10xf32>
    %59 = vector.shape_cast %58 : vector<10xf32> to vector<10x1xf32>
    %60 = vector.broadcast %59 : vector<10x1xf32> to vector<10x10xf32>
    %61 = arith.subf %57, %60 : vector<10x10xf32>
    %62 = math.exp %61 : vector<10x10xf32>
    %cst_24 = arith.constant dense<0.000000e+00> : vector<10xf32>
    %63 = vector.multi_reduction <add>, %62, %cst_24 [1] : vector<10x10xf32> to vector<10xf32>
    %64 = vector.shape_cast %63 : vector<10xf32> to vector<10x1xf32>
    %65 = tpu.reciprocal %64 {approx = true} : vector<10x1xf32> -> vector<10x1xf32>
    %66 = vector.broadcast %65 : vector<10x1xf32> to vector<10x10xf32>
    %67 = arith.mulf %62, %66 : vector<10x10xf32>
    %cst_25 = arith.constant dense<0.000000e+00> : vector<10x8xf32>
    %68 = tpu.matmul %67, %55, %cst_25 {dimension_numbers = #tpu.dot_dimension_numbers<[1], [0], [0], [1], [0, 0, 1, 1], [], []>} : vector<10x10xf32>, vector<10x8xf32>, vector<10x8xf32> -> vector<10x8xf32>
    %69 = vector.extract_strided_slice %36 {offsets = [0, 16], sizes = [10, 8], strides = [1, 1]} : vector<10x96xf32> to vector<10x8xf32>
    %70 = vector.extract_strided_slice %36 {offsets = [0, 48], sizes = [10, 8], strides = [1, 1]} : vector<10x96xf32> to vector<10x8xf32>
    %71 = vector.extract_strided_slice %36 {offsets = [0, 80], sizes = [10, 8], strides = [1, 1]} : vector<10x96xf32> to vector<10x8xf32>
    %cst_26 = arith.constant dense<0.000000e+00> : vector<10x10xf32>
    %72 = tpu.matmul %69, %70, %cst_26 {dimension_numbers = #tpu.dot_dimension_numbers<[1], [1], [0], [0], [0, 0, 1, 0], [], []>} : vector<10x8xf32>, vector<10x8xf32>, vector<10x10xf32> -> vector<10x10xf32>
    %73 = arith.addf %72, %0 : vector<10x10xf32>
    %cst_27 = arith.constant dense<0xFF800000> : vector<10xf32>
    %74 = vector.multi_reduction <maximumf>, %73, %cst_27 [1] : vector<10x10xf32> to vector<10xf32>
    %75 = vector.shape_cast %74 : vector<10xf32> to vector<10x1xf32>
    %76 = vector.broadcast %75 : vector<10x1xf32> to vector<10x10xf32>
    %77 = arith.subf %73, %76 : vector<10x10xf32>
    %78 = math.exp %77 : vector<10x10xf32>
    %cst_28 = arith.constant dense<0.000000e+00> : vector<10xf32>
    %79 = vector.multi_reduction <add>, %78, %cst_28 [1] : vector<10x10xf32> to vector<10xf32>
    %80 = vector.shape_cast %79 : vector<10xf32> to vector<10x1xf32>
    %81 = tpu.reciprocal %80 {approx = true} : vector<10x1xf32> -> vector<10x1xf32>
    %82 = vector.broadcast %81 : vector<10x1xf32> to vector<10x10xf32>
    %83 = arith.mulf %78, %82 : vector<10x10xf32>
    %cst_29 = arith.constant dense<0.000000e+00> : vector<10x8xf32>
    %84 = tpu.matmul %83, %71, %cst_29 {dimension_numbers = #tpu.dot_dimension_numbers<[1], [0], [0], [1], [0, 0, 1, 1], [], []>} : vector<10x10xf32>, vector<10x8xf32>, vector<10x8xf32> -> vector<10x8xf32>
    %85 = vector.extract_strided_slice %36 {offsets = [0, 24], sizes = [10, 8], strides = [1, 1]} : vector<10x96xf32> to vector<10x8xf32>
    %86 = vector.extract_strided_slice %36 {offsets = [0, 56], sizes = [10, 8], strides = [1, 1]} : vector<10x96xf32> to vector<10x8xf32>
    %87 = vector.extract_strided_slice %36 {offsets = [0, 88], sizes = [10, 8], strides = [1, 1]} : vector<10x96xf32> to vector<10x8xf32>
    %cst_30 = arith.constant dense<0.000000e+00> : vector<10x10xf32>
    %88 = tpu.matmul %85, %86, %cst_30 {dimension_numbers = #tpu.dot_dimension_numbers<[1], [1], [0], [0], [0, 0, 1, 0], [], []>} : vector<10x8xf32>, vector<10x8xf32>, vector<10x10xf32> -> vector<10x10xf32>
    %89 = arith.addf %88, %0 : vector<10x10xf32>
    %cst_31 = arith.constant dense<0xFF800000> : vector<10xf32>
    %90 = vector.multi_reduction <maximumf>, %89, %cst_31 [1] : vector<10x10xf32> to vector<10xf32>
    %91 = vector.shape_cast %90 : vector<10xf32> to vector<10x1xf32>
    %92 = vector.broadcast %91 : vector<10x1xf32> to vector<10x10xf32>
    %93 = arith.subf %89, %92 : vector<10x10xf32>
    %94 = math.exp %93 : vector<10x10xf32>
    %cst_32 = arith.constant dense<0.000000e+00> : vector<10xf32>
    %95 = vector.multi_reduction <add>, %94, %cst_32 [1] : vector<10x10xf32> to vector<10xf32>
    %96 = vector.shape_cast %95 : vector<10xf32> to vector<10x1xf32>
    %97 = tpu.reciprocal %96 {approx = true} : vector<10x1xf32> -> vector<10x1xf32>
    %98 = vector.broadcast %97 : vector<10x1xf32> to vector<10x10xf32>
    %99 = arith.mulf %94, %98 : vector<10x10xf32>
    %cst_33 = arith.constant dense<0.000000e+00> : vector<10x8xf32>
    %100 = tpu.matmul %99, %87, %cst_33 {dimension_numbers = #tpu.dot_dimension_numbers<[1], [0], [0], [1], [0, 0, 1, 1], [], []>} : vector<10x10xf32>, vector<10x8xf32>, vector<10x8xf32> -> vector<10x8xf32>
    %101 = tpu.concatenate %52, %68, %84, %100 in 1 : vector<10x8xf32>, vector<10x8xf32>, vector<10x8xf32>, vector<10x8xf32> -> vector<10x32xf32>
    %c856 = arith.constant 856 : index
    %c0_34 = arith.constant 0 : index
    %102 = vector.load %arg1[%c856, %c0_34] : memref<1184x32xf32, #tpu.memory_space<vmem>>, vector<32x32xf32>
    %cst_35 = arith.constant dense<0.000000e+00> : vector<10x32xf32>
    %103 = tpu.matmul %101, %102, %cst_35 {dimension_numbers = #tpu.dot_dimension_numbers<[1], [0], [0], [1], [0, 0, 1, 1], [], []>} : vector<10x32xf32>, vector<32x32xf32>, vector<10x32xf32> -> vector<10x32xf32>
    %104 = arith.addf %5, %103 : vector<10x32xf32>
    %c850 = arith.constant 850 : index
    %c0_36 = arith.constant 0 : index
    %105 = vector.load %arg1[%c850, %c0_36] : memref<1184x32xf32, #tpu.memory_space<vmem>>, vector<1x32xf32>
    %106 = vector.broadcast %105 : vector<1x32xf32> to vector<10x32xf32>
    %107 = arith.addf %104, %106 : vector<10x32xf32>
    %c851 = arith.constant 851 : index
    %c0_37 = arith.constant 0 : index
    %108 = vector.load %arg1[%c851, %c0_37] : memref<1184x32xf32, #tpu.memory_space<vmem>>, vector<1x32xf32>
    %c852 = arith.constant 852 : index
    %c0_38 = arith.constant 0 : index
    %109 = vector.load %arg1[%c852, %c0_38] : memref<1184x32xf32, #tpu.memory_space<vmem>>, vector<1x32xf32>
    %cst_39 = arith.constant dense<0.000000e+00> : vector<10xf32>
    %110 = vector.multi_reduction <add>, %107, %cst_39 [1] : vector<10x32xf32> to vector<10xf32>
    %111 = vector.shape_cast %110 : vector<10xf32> to vector<10x1xf32>
    %cst_40 = arith.constant 3.200000e+01 : f32
    %112 = vector.broadcast %cst_40 : f32 to vector<10x1xf32>
    %113 = arith.divf %111, %112 : vector<10x1xf32>
    %114 = arith.mulf %107, %107 : vector<10x32xf32>
    %cst_41 = arith.constant dense<0.000000e+00> : vector<10xf32>
    %115 = vector.multi_reduction <add>, %114, %cst_41 [1] : vector<10x32xf32> to vector<10xf32>
    %116 = vector.shape_cast %115 : vector<10xf32> to vector<10x1xf32>
    %cst_42 = arith.constant 3.200000e+01 : f32
    %117 = vector.broadcast %cst_42 : f32 to vector<10x1xf32>
    %118 = arith.divf %116, %117 : vector<10x1xf32>
    %119 = arith.mulf %113, %113 : vector<10x1xf32>
    %120 = arith.subf %118, %119 : vector<10x1xf32>
    %121 = vector.broadcast %113 : vector<10x1xf32> to vector<10x32xf32>
    %122 = arith.subf %107, %121 : vector<10x32xf32>
    %cst_43 = arith.constant 9.99999997E-7 : f32
    %123 = vector.broadcast %cst_43 : f32 to vector<10x1xf32>
    %124 = arith.addf %120, %123 : vector<10x1xf32>
    %125 = math.rsqrt %124 : vector<10x1xf32>
    %126 = vector.broadcast %125 : vector<10x1xf32> to vector<10x32xf32>
    %127 = arith.mulf %122, %126 : vector<10x32xf32>
    %128 = vector.broadcast %108 : vector<1x32xf32> to vector<10x32xf32>
    %129 = arith.mulf %127, %128 : vector<10x32xf32>
    %130 = vector.broadcast %109 : vector<1x32xf32> to vector<10x32xf32>
    %131 = arith.addf %129, %130 : vector<10x32xf32>
    %c0_44 = arith.constant 0 : index
    %c40 = arith.constant 40 : index
    %c0_45 = arith.constant 0 : index
    %132 = vector.load %arg2[%c0_44, %c40, %c0_45] : memref<2x80x128xf32, #tpu.memory_space<vmem>>, vector<1x32x128xf32>
    %133 = vector.shape_cast %132 : vector<1x32x128xf32> to vector<32x128xf32>
    %c0_46 = arith.constant 0 : index
    %c72 = arith.constant 72 : index
    %c0_47 = arith.constant 0 : index
    %134 = vector.load %arg2[%c0_46, %c72, %c0_47] : memref<2x80x128xf32, #tpu.memory_space<vmem>>, vector<1x1x128xf32>
    %135 = vector.shape_cast %134 : vector<1x1x128xf32> to vector<1x128xf32>
    %cst_48 = arith.constant dense<0.000000e+00> : vector<10x128xf32>
    %136 = tpu.matmul %131, %133, %cst_48 {dimension_numbers = #tpu.dot_dimension_numbers<[1], [0], [0], [1], [0, 0, 1, 1], [], []>} : vector<10x32xf32>, vector<32x128xf32>, vector<10x128xf32> -> vector<10x128xf32>
    %137 = vector.broadcast %135 : vector<1x128xf32> to vector<10x128xf32>
    %138 = arith.addf %136, %137 : vector<10x128xf32>
    %139 = arith.mulf %138, %138 : vector<10x128xf32>
    %140 = arith.mulf %138, %139 : vector<10x128xf32>
    %cst_49 = arith.constant 4.471500e-02 : f32
    %141 = vector.broadcast %cst_49 : f32 to vector<10x128xf32>
    %142 = arith.mulf %141, %140 : vector<10x128xf32>
    %143 = arith.addf %138, %142 : vector<10x128xf32>
    %cst_50 = arith.constant 0.797884583 : f32
    %144 = vector.broadcast %cst_50 : f32 to vector<10x128xf32>
    %145 = arith.mulf %144, %143 : vector<10x128xf32>
    %146 = math.tanh %145 : vector<10x128xf32>
    %cst_51 = arith.constant 1.000000e+00 : f32
    %147 = vector.broadcast %cst_51 : f32 to vector<10x128xf32>
    %148 = arith.addf %147, %146 : vector<10x128xf32>
    %cst_52 = arith.constant 5.000000e-01 : f32
    %149 = vector.broadcast %cst_52 : f32 to vector<10x128xf32>
    %150 = arith.mulf %149, %148 : vector<10x128xf32>
    %151 = arith.mulf %138, %150 : vector<10x128xf32>
    %c888 = arith.constant 888 : index
    %c0_53 = arith.constant 0 : index
    %152 = vector.load %arg1[%c888, %c0_53] : memref<1184x32xf32, #tpu.memory_space<vmem>>, vector<128x32xf32>
    %cst_54 = arith.constant dense<0.000000e+00> : vector<10x32xf32>
    %153 = tpu.matmul %151, %152, %cst_54 {dimension_numbers = #tpu.dot_dimension_numbers<[1], [0], [0], [1], [0, 0, 1, 1], [], []>} : vector<10x128xf32>, vector<128x32xf32>, vector<10x32xf32> -> vector<10x32xf32>
    %154 = arith.addf %107, %153 : vector<10x32xf32>
    %c853 = arith.constant 853 : index
    %c0_55 = arith.constant 0 : index
    %155 = vector.load %arg1[%c853, %c0_55] : memref<1184x32xf32, #tpu.memory_space<vmem>>, vector<1x32xf32>
    %156 = vector.broadcast %155 : vector<1x32xf32> to vector<10x32xf32>
    %157 = arith.addf %154, %156 : vector<10x32xf32>
    %c1016 = arith.constant 1016 : index
    %c0_56 = arith.constant 0 : index
    %158 = vector.load %arg1[%c1016, %c0_56] : memref<1184x32xf32, #tpu.memory_space<vmem>>, vector<1x32xf32>
    %c1017 = arith.constant 1017 : index
    %c0_57 = arith.constant 0 : index
    %159 = vector.load %arg1[%c1017, %c0_57] : memref<1184x32xf32, #tpu.memory_space<vmem>>, vector<1x32xf32>
    %cst_58 = arith.constant dense<0.000000e+00> : vector<10xf32>
    %160 = vector.multi_reduction <add>, %157, %cst_58 [1] : vector<10x32xf32> to vector<10xf32>
    %161 = vector.shape_cast %160 : vector<10xf32> to vector<10x1xf32>
    %cst_59 = arith.constant 3.200000e+01 : f32
    %162 = vector.broadcast %cst_59 : f32 to vector<10x1xf32>
    %163 = arith.divf %161, %162 : vector<10x1xf32>
    %164 = arith.mulf %157, %157 : vector<10x32xf32>
    %cst_60 = arith.constant dense<0.000000e+00> : vector<10xf32>
    %165 = vector.multi_reduction <add>, %164, %cst_60 [1] : vector<10x32xf32> to vector<10xf32>
    %166 = vector.shape_cast %165 : vector<10xf32> to vector<10x1xf32>
    %cst_61 = arith.constant 3.200000e+01 : f32
    %167 = vector.broadcast %cst_61 : f32 to vector<10x1xf32>
    %168 = arith.divf %166, %167 : vector<10x1xf32>
    %169 = arith.mulf %163, %163 : vector<10x1xf32>
    %170 = arith.subf %168, %169 : vector<10x1xf32>
    %171 = vector.broadcast %163 : vector<10x1xf32> to vector<10x32xf32>
    %172 = arith.subf %157, %171 : vector<10x32xf32>
    %cst_62 = arith.constant 9.99999997E-7 : f32
    %173 = vector.broadcast %cst_62 : f32 to vector<10x1xf32>
    %174 = arith.addf %170, %173 : vector<10x1xf32>
    %175 = math.rsqrt %174 : vector<10x1xf32>
    %176 = vector.broadcast %175 : vector<10x1xf32> to vector<10x32xf32>
    %177 = arith.mulf %172, %176 : vector<10x32xf32>
    %178 = vector.broadcast %158 : vector<1x32xf32> to vector<10x32xf32>
    %179 = arith.mulf %177, %178 : vector<10x32xf32>
    %180 = vector.broadcast %159 : vector<1x32xf32> to vector<10x32xf32>
    %181 = arith.addf %179, %180 : vector<10x32xf32>
    %c1 = arith.constant 1 : index
    %c0_63 = arith.constant 0 : index
    %c0_64 = arith.constant 0 : index
    %182 = vector.load %arg2[%c1, %c0_63, %c0_64] : memref<2x80x128xf32, #tpu.memory_space<vmem>>, vector<1x32x96xf32>
    %183 = vector.shape_cast %182 : vector<1x32x96xf32> to vector<32x96xf32>
    %c1_65 = arith.constant 1 : index
    %c32_66 = arith.constant 32 : index
    %c0_67 = arith.constant 0 : index
    %184 = vector.load %arg2[%c1_65, %c32_66, %c0_67] : memref<2x80x128xf32, #tpu.memory_space<vmem>>, vector<1x1x96xf32>
    %185 = vector.shape_cast %184 : vector<1x1x96xf32> to vector<1x96xf32>
    %cst_68 = arith.constant dense<0.000000e+00> : vector<10x96xf32>
    %186 = tpu.matmul %181, %183, %cst_68 {dimension_numbers = #tpu.dot_dimension_numbers<[1], [0], [0], [1], [0, 0, 1, 1], [], []>} : vector<10x32xf32>, vector<32x96xf32>, vector<10x96xf32> -> vector<10x96xf32>
    %187 = vector.broadcast %185 : vector<1x96xf32> to vector<10x96xf32>
    %188 = arith.addf %186, %187 : vector<10x96xf32>
    %189 = vector.extract_strided_slice %188 {offsets = [0, 0], sizes = [10, 8], strides = [1, 1]} : vector<10x96xf32> to vector<10x8xf32>
    %190 = vector.extract_strided_slice %188 {offsets = [0, 32], sizes = [10, 8], strides = [1, 1]} : vector<10x96xf32> to vector<10x8xf32>
    %191 = vector.extract_strided_slice %188 {offsets = [0, 64], sizes = [10, 8], strides = [1, 1]} : vector<10x96xf32> to vector<10x8xf32>
    %cst_69 = arith.constant dense<0.000000e+00> : vector<10x10xf32>
    %192 = tpu.matmul %189, %190, %cst_69 {dimension_numbers = #tpu.dot_dimension_numbers<[1], [1], [0], [0], [0, 0, 1, 0], [], []>} : vector<10x8xf32>, vector<10x8xf32>, vector<10x10xf32> -> vector<10x10xf32>
    %193 = arith.addf %192, %0 : vector<10x10xf32>
    %cst_70 = arith.constant dense<0xFF800000> : vector<10xf32>
    %194 = vector.multi_reduction <maximumf>, %193, %cst_70 [1] : vector<10x10xf32> to vector<10xf32>
    %195 = vector.shape_cast %194 : vector<10xf32> to vector<10x1xf32>
    %196 = vector.broadcast %195 : vector<10x1xf32> to vector<10x10xf32>
    %197 = arith.subf %193, %196 : vector<10x10xf32>
    %198 = math.exp %197 : vector<10x10xf32>
    %cst_71 = arith.constant dense<0.000000e+00> : vector<10xf32>
    %199 = vector.multi_reduction <add>, %198, %cst_71 [1] : vector<10x10xf32> to vector<10xf32>
    %200 = vector.shape_cast %199 : vector<10xf32> to vector<10x1xf32>
    %201 = tpu.reciprocal %200 {approx = true} : vector<10x1xf32> -> vector<10x1xf32>
    %202 = vector.broadcast %201 : vector<10x1xf32> to vector<10x10xf32>
    %203 = arith.mulf %198, %202 : vector<10x10xf32>
    %cst_72 = arith.constant dense<0.000000e+00> : vector<10x8xf32>
    %204 = tpu.matmul %203, %191, %cst_72 {dimension_numbers = #tpu.dot_dimension_numbers<[1], [0], [0], [1], [0, 0, 1, 1], [], []>} : vector<10x10xf32>, vector<10x8xf32>, vector<10x8xf32> -> vector<10x8xf32>
    %205 = vector.extract_strided_slice %188 {offsets = [0, 8], sizes = [10, 8], strides = [1, 1]} : vector<10x96xf32> to vector<10x8xf32>
    %206 = vector.extract_strided_slice %188 {offsets = [0, 40], sizes = [10, 8], strides = [1, 1]} : vector<10x96xf32> to vector<10x8xf32>
    %207 = vector.extract_strided_slice %188 {offsets = [0, 72], sizes = [10, 8], strides = [1, 1]} : vector<10x96xf32> to vector<10x8xf32>
    %cst_73 = arith.constant dense<0.000000e+00> : vector<10x10xf32>
    %208 = tpu.matmul %205, %206, %cst_73 {dimension_numbers = #tpu.dot_dimension_numbers<[1], [1], [0], [0], [0, 0, 1, 0], [], []>} : vector<10x8xf32>, vector<10x8xf32>, vector<10x10xf32> -> vector<10x10xf32>
    %209 = arith.addf %208, %0 : vector<10x10xf32>
    %cst_74 = arith.constant dense<0xFF800000> : vector<10xf32>
    %210 = vector.multi_reduction <maximumf>, %209, %cst_74 [1] : vector<10x10xf32> to vector<10xf32>
    %211 = vector.shape_cast %210 : vector<10xf32> to vector<10x1xf32>
    %212 = vector.broadcast %211 : vector<10x1xf32> to vector<10x10xf32>
    %213 = arith.subf %209, %212 : vector<10x10xf32>
    %214 = math.exp %213 : vector<10x10xf32>
    %cst_75 = arith.constant dense<0.000000e+00> : vector<10xf32>
    %215 = vector.multi_reduction <add>, %214, %cst_75 [1] : vector<10x10xf32> to vector<10xf32>
    %216 = vector.shape_cast %215 : vector<10xf32> to vector<10x1xf32>
    %217 = tpu.reciprocal %216 {approx = true} : vector<10x1xf32> -> vector<10x1xf32>
    %218 = vector.broadcast %217 : vector<10x1xf32> to vector<10x10xf32>
    %219 = arith.mulf %214, %218 : vector<10x10xf32>
    %cst_76 = arith.constant dense<0.000000e+00> : vector<10x8xf32>
    %220 = tpu.matmul %219, %207, %cst_76 {dimension_numbers = #tpu.dot_dimension_numbers<[1], [0], [0], [1], [0, 0, 1, 1], [], []>} : vector<10x10xf32>, vector<10x8xf32>, vector<10x8xf32> -> vector<10x8xf32>
    %221 = vector.extract_strided_slice %188 {offsets = [0, 16], sizes = [10, 8], strides = [1, 1]} : vector<10x96xf32> to vector<10x8xf32>
    %222 = vector.extract_strided_slice %188 {offsets = [0, 48], sizes = [10, 8], strides = [1, 1]} : vector<10x96xf32> to vector<10x8xf32>
    %223 = vector.extract_strided_slice %188 {offsets = [0, 80], sizes = [10, 8], strides = [1, 1]} : vector<10x96xf32> to vector<10x8xf32>
    %cst_77 = arith.constant dense<0.000000e+00> : vector<10x10xf32>
    %224 = tpu.matmul %221, %222, %cst_77 {dimension_numbers = #tpu.dot_dimension_numbers<[1], [1], [0], [0], [0, 0, 1, 0], [], []>} : vector<10x8xf32>, vector<10x8xf32>, vector<10x10xf32> -> vector<10x10xf32>
    %225 = arith.addf %224, %0 : vector<10x10xf32>
    %cst_78 = arith.constant dense<0xFF800000> : vector<10xf32>
    %226 = vector.multi_reduction <maximumf>, %225, %cst_78 [1] : vector<10x10xf32> to vector<10xf32>
    %227 = vector.shape_cast %226 : vector<10xf32> to vector<10x1xf32>
    %228 = vector.broadcast %227 : vector<10x1xf32> to vector<10x10xf32>
    %229 = arith.subf %225, %228 : vector<10x10xf32>
    %230 = math.exp %229 : vector<10x10xf32>
    %cst_79 = arith.constant dense<0.000000e+00> : vector<10xf32>
    %231 = vector.multi_reduction <add>, %230, %cst_79 [1] : vector<10x10xf32> to vector<10xf32>
    %232 = vector.shape_cast %231 : vector<10xf32> to vector<10x1xf32>
    %233 = tpu.reciprocal %232 {approx = true} : vector<10x1xf32> -> vector<10x1xf32>
    %234 = vector.broadcast %233 : vector<10x1xf32> to vector<10x10xf32>
    %235 = arith.mulf %230, %234 : vector<10x10xf32>
    %cst_80 = arith.constant dense<0.000000e+00> : vector<10x8xf32>
    %236 = tpu.matmul %235, %223, %cst_80 {dimension_numbers = #tpu.dot_dimension_numbers<[1], [0], [0], [1], [0, 0, 1, 1], [], []>} : vector<10x10xf32>, vector<10x8xf32>, vector<10x8xf32> -> vector<10x8xf32>
    %237 = vector.extract_strided_slice %188 {offsets = [0, 24], sizes = [10, 8], strides = [1, 1]} : vector<10x96xf32> to vector<10x8xf32>
    %238 = vector.extract_strided_slice %188 {offsets = [0, 56], sizes = [10, 8], strides = [1, 1]} : vector<10x96xf32> to vector<10x8xf32>
    %239 = vector.extract_strided_slice %188 {offsets = [0, 88], sizes = [10, 8], strides = [1, 1]} : vector<10x96xf32> to vector<10x8xf32>
    %cst_81 = arith.constant dense<0.000000e+00> : vector<10x10xf32>
    %240 = tpu.matmul %237, %238, %cst_81 {dimension_numbers = #tpu.dot_dimension_numbers<[1], [1], [0], [0], [0, 0, 1, 0], [], []>} : vector<10x8xf32>, vector<10x8xf32>, vector<10x10xf32> -> vector<10x10xf32>
    %241 = arith.addf %240, %0 : vector<10x10xf32>
    %cst_82 = arith.constant dense<0xFF800000> : vector<10xf32>
    %242 = vector.multi_reduction <maximumf>, %241, %cst_82 [1] : vector<10x10xf32> to vector<10xf32>
    %243 = vector.shape_cast %242 : vector<10xf32> to vector<10x1xf32>
    %244 = vector.broadcast %243 : vector<10x1xf32> to vector<10x10xf32>
    %245 = arith.subf %241, %244 : vector<10x10xf32>
    %246 = math.exp %245 : vector<10x10xf32>
    %cst_83 = arith.constant dense<0.000000e+00> : vector<10xf32>
    %247 = vector.multi_reduction <add>, %246, %cst_83 [1] : vector<10x10xf32> to vector<10xf32>
    %248 = vector.shape_cast %247 : vector<10xf32> to vector<10x1xf32>
    %249 = tpu.reciprocal %248 {approx = true} : vector<10x1xf32> -> vector<10x1xf32>
    %250 = vector.broadcast %249 : vector<10x1xf32> to vector<10x10xf32>
    %251 = arith.mulf %246, %250 : vector<10x10xf32>
    %cst_84 = arith.constant dense<0.000000e+00> : vector<10x8xf32>
    %252 = tpu.matmul %251, %239, %cst_84 {dimension_numbers = #tpu.dot_dimension_numbers<[1], [0], [0], [1], [0, 0, 1, 1], [], []>} : vector<10x10xf32>, vector<10x8xf32>, vector<10x8xf32> -> vector<10x8xf32>
    %253 = tpu.concatenate %204, %220, %236, %252 in 1 : vector<10x8xf32>, vector<10x8xf32>, vector<10x8xf32>, vector<10x8xf32> -> vector<10x32xf32>
    %c1024 = arith.constant 1024 : index
    %c0_85 = arith.constant 0 : index
    %254 = vector.load %arg1[%c1024, %c0_85] : memref<1184x32xf32, #tpu.memory_space<vmem>>, vector<32x32xf32>
    %cst_86 = arith.constant dense<0.000000e+00> : vector<10x32xf32>
    %255 = tpu.matmul %253, %254, %cst_86 {dimension_numbers = #tpu.dot_dimension_numbers<[1], [0], [0], [1], [0, 0, 1, 1], [], []>} : vector<10x32xf32>, vector<32x32xf32>, vector<10x32xf32> -> vector<10x32xf32>
    %256 = arith.addf %157, %255 : vector<10x32xf32>
    %c1018 = arith.constant 1018 : index
    %c0_87 = arith.constant 0 : index
    %257 = vector.load %arg1[%c1018, %c0_87] : memref<1184x32xf32, #tpu.memory_space<vmem>>, vector<1x32xf32>
    %258 = vector.broadcast %257 : vector<1x32xf32> to vector<10x32xf32>
    %259 = arith.addf %256, %258 : vector<10x32xf32>
    %c1019 = arith.constant 1019 : index
    %c0_88 = arith.constant 0 : index
    %260 = vector.load %arg1[%c1019, %c0_88] : memref<1184x32xf32, #tpu.memory_space<vmem>>, vector<1x32xf32>
    %c1020 = arith.constant 1020 : index
    %c0_89 = arith.constant 0 : index
    %261 = vector.load %arg1[%c1020, %c0_89] : memref<1184x32xf32, #tpu.memory_space<vmem>>, vector<1x32xf32>
    %cst_90 = arith.constant dense<0.000000e+00> : vector<10xf32>
    %262 = vector.multi_reduction <add>, %259, %cst_90 [1] : vector<10x32xf32> to vector<10xf32>
    %263 = vector.shape_cast %262 : vector<10xf32> to vector<10x1xf32>
    %cst_91 = arith.constant 3.200000e+01 : f32
    %264 = vector.broadcast %cst_91 : f32 to vector<10x1xf32>
    %265 = arith.divf %263, %264 : vector<10x1xf32>
    %266 = arith.mulf %259, %259 : vector<10x32xf32>
    %cst_92 = arith.constant dense<0.000000e+00> : vector<10xf32>
    %267 = vector.multi_reduction <add>, %266, %cst_92 [1] : vector<10x32xf32> to vector<10xf32>
    %268 = vector.shape_cast %267 : vector<10xf32> to vector<10x1xf32>
    %cst_93 = arith.constant 3.200000e+01 : f32
    %269 = vector.broadcast %cst_93 : f32 to vector<10x1xf32>
    %270 = arith.divf %268, %269 : vector<10x1xf32>
    %271 = arith.mulf %265, %265 : vector<10x1xf32>
    %272 = arith.subf %270, %271 : vector<10x1xf32>
    %273 = vector.broadcast %265 : vector<10x1xf32> to vector<10x32xf32>
    %274 = arith.subf %259, %273 : vector<10x32xf32>
    %cst_94 = arith.constant 9.99999997E-7 : f32
    %275 = vector.broadcast %cst_94 : f32 to vector<10x1xf32>
    %276 = arith.addf %272, %275 : vector<10x1xf32>
    %277 = math.rsqrt %276 : vector<10x1xf32>
    %278 = vector.broadcast %277 : vector<10x1xf32> to vector<10x32xf32>
    %279 = arith.mulf %274, %278 : vector<10x32xf32>
    %280 = vector.broadcast %260 : vector<1x32xf32> to vector<10x32xf32>
    %281 = arith.mulf %279, %280 : vector<10x32xf32>
    %282 = vector.broadcast %261 : vector<1x32xf32> to vector<10x32xf32>
    %283 = arith.addf %281, %282 : vector<10x32xf32>
    %c1_95 = arith.constant 1 : index
    %c40_96 = arith.constant 40 : index
    %c0_97 = arith.constant 0 : index
    %284 = vector.load %arg2[%c1_95, %c40_96, %c0_97] : memref<2x80x128xf32, #tpu.memory_space<vmem>>, vector<1x32x128xf32>
    %285 = vector.shape_cast %284 : vector<1x32x128xf32> to vector<32x128xf32>
    %c1_98 = arith.constant 1 : index
    %c72_99 = arith.constant 72 : index
    %c0_100 = arith.constant 0 : index
    %286 = vector.load %arg2[%c1_98, %c72_99, %c0_100] : memref<2x80x128xf32, #tpu.memory_space<vmem>>, vector<1x1x128xf32>
    %287 = vector.shape_cast %286 : vector<1x1x128xf32> to vector<1x128xf32>
    %cst_101 = arith.constant dense<0.000000e+00> : vector<10x128xf32>
    %288 = tpu.matmul %283, %285, %cst_101 {dimension_numbers = #tpu.dot_dimension_numbers<[1], [0], [0], [1], [0, 0, 1, 1], [], []>} : vector<10x32xf32>, vector<32x128xf32>, vector<10x128xf32> -> vector<10x128xf32>
    %289 = vector.broadcast %287 : vector<1x128xf32> to vector<10x128xf32>
    %290 = arith.addf %288, %289 : vector<10x128xf32>
    %291 = arith.mulf %290, %290 : vector<10x128xf32>
    %292 = arith.mulf %290, %291 : vector<10x128xf32>
    %cst_102 = arith.constant 4.471500e-02 : f32
    %293 = vector.broadcast %cst_102 : f32 to vector<10x128xf32>
    %294 = arith.mulf %293, %292 : vector<10x128xf32>
    %295 = arith.addf %290, %294 : vector<10x128xf32>
    %cst_103 = arith.constant 0.797884583 : f32
    %296 = vector.broadcast %cst_103 : f32 to vector<10x128xf32>
    %297 = arith.mulf %296, %295 : vector<10x128xf32>
    %298 = math.tanh %297 : vector<10x128xf32>
    %cst_104 = arith.constant 1.000000e+00 : f32
    %299 = vector.broadcast %cst_104 : f32 to vector<10x128xf32>
    %300 = arith.addf %299, %298 : vector<10x128xf32>
    %cst_105 = arith.constant 5.000000e-01 : f32
    %301 = vector.broadcast %cst_105 : f32 to vector<10x128xf32>
    %302 = arith.mulf %301, %300 : vector<10x128xf32>
    %303 = arith.mulf %290, %302 : vector<10x128xf32>
    %c1056 = arith.constant 1056 : index
    %c0_106 = arith.constant 0 : index
    %304 = vector.load %arg1[%c1056, %c0_106] : memref<1184x32xf32, #tpu.memory_space<vmem>>, vector<128x32xf32>
    %cst_107 = arith.constant dense<0.000000e+00> : vector<10x32xf32>
    %305 = tpu.matmul %303, %304, %cst_107 {dimension_numbers = #tpu.dot_dimension_numbers<[1], [0], [0], [1], [0, 0, 1, 1], [], []>} : vector<10x128xf32>, vector<128x32xf32>, vector<10x32xf32> -> vector<10x32xf32>
    %306 = arith.addf %259, %305 : vector<10x32xf32>
    %c1021 = arith.constant 1021 : index
    %c0_108 = arith.constant 0 : index
    %307 = vector.load %arg1[%c1021, %c0_108] : memref<1184x32xf32, #tpu.memory_space<vmem>>, vector<1x32xf32>
    %308 = vector.broadcast %307 : vector<1x32xf32> to vector<10x32xf32>
    %309 = arith.addf %306, %308 : vector<10x32xf32>
    %c784 = arith.constant 784 : index
    %c0_109 = arith.constant 0 : index
    %310 = vector.load %arg1[%c784, %c0_109] : memref<1184x32xf32, #tpu.memory_space<vmem>>, vector<1x32xf32>
    %c785 = arith.constant 785 : index
    %c0_110 = arith.constant 0 : index
    %311 = vector.load %arg1[%c785, %c0_110] : memref<1184x32xf32, #tpu.memory_space<vmem>>, vector<1x32xf32>
    %cst_111 = arith.constant dense<0.000000e+00> : vector<10xf32>
    %312 = vector.multi_reduction <add>, %309, %cst_111 [1] : vector<10x32xf32> to vector<10xf32>
    %313 = vector.shape_cast %312 : vector<10xf32> to vector<10x1xf32>
    %cst_112 = arith.constant 3.200000e+01 : f32
    %314 = vector.broadcast %cst_112 : f32 to vector<10x1xf32>
    %315 = arith.divf %313, %314 : vector<10x1xf32>
    %316 = arith.mulf %309, %309 : vector<10x32xf32>
    %cst_113 = arith.constant dense<0.000000e+00> : vector<10xf32>
    %317 = vector.multi_reduction <add>, %316, %cst_113 [1] : vector<10x32xf32> to vector<10xf32>
    %318 = vector.shape_cast %317 : vector<10xf32> to vector<10x1xf32>
    %cst_114 = arith.constant 3.200000e+01 : f32
    %319 = vector.broadcast %cst_114 : f32 to vector<10x1xf32>
    %320 = arith.divf %318, %319 : vector<10x1xf32>
    %321 = arith.mulf %315, %315 : vector<10x1xf32>
    %322 = arith.subf %320, %321 : vector<10x1xf32>
    %323 = vector.broadcast %315 : vector<10x1xf32> to vector<10x32xf32>
    %324 = arith.subf %309, %323 : vector<10x32xf32>
    %cst_115 = arith.constant 9.99999997E-7 : f32
    %325 = vector.broadcast %cst_115 : f32 to vector<10x1xf32>
    %326 = arith.addf %322, %325 : vector<10x1xf32>
    %327 = math.rsqrt %326 : vector<10x1xf32>
    %328 = vector.broadcast %327 : vector<10x1xf32> to vector<10x32xf32>
    %329 = arith.mulf %324, %328 : vector<10x32xf32>
    %330 = vector.broadcast %310 : vector<1x32xf32> to vector<10x32xf32>
    %331 = arith.mulf %329, %330 : vector<10x32xf32>
    %332 = vector.broadcast %311 : vector<1x32xf32> to vector<10x32xf32>
    %333 = arith.addf %331, %332 : vector<10x32xf32>
    %c792 = arith.constant 792 : index
    %c0_116 = arith.constant 0 : index
    %334 = vector.load %arg1[%c792, %c0_116] : memref<1184x32xf32, #tpu.memory_space<vmem>>, vector<32x32xf32>
    %cst_117 = arith.constant dense<0.000000e+00> : vector<10x32xf32>
    %335 = tpu.matmul %333, %334, %cst_117 {dimension_numbers = #tpu.dot_dimension_numbers<[1], [0], [0], [1], [0, 0, 1, 1], [], []>} : vector<10x32xf32>, vector<32x32xf32>, vector<10x32xf32> -> vector<10x32xf32>
    %c824 = arith.constant 824 : index
    %c0_118 = arith.constant 0 : index
    %336 = vector.load %arg1[%c824, %c0_118] : memref<1184x32xf32, #tpu.memory_space<vmem>>, vector<1x32xf32>
    %337 = vector.broadcast %336 : vector<1x32xf32> to vector<10x32xf32>
    %338 = arith.addf %335, %337 : vector<10x32xf32>
    %339 = tpu.concatenate %157, %309, %333, %338 in 1 : vector<10x32xf32>, vector<10x32xf32>, vector<10x32xf32>, vector<10x32xf32> -> vector<10x128xf32>
    %c0_119 = arith.constant 0 : index
    %c0_120 = arith.constant 0 : index
    %340 = vector.load %arg3[%c0_119, %c0_120] : memref<10x128xf32, #tpu.memory_space<vmem>>, vector<10x128xf32>
    tpu.vector_store %arg3[%c0_119, %c0_120], %339 {strides = array<i32>} : memref<10x128xf32, #tpu.memory_space<vmem>>, vector<10x128xf32>,
    return
  }
}

</mosaic_0001>

<llo_original>
// kernel: vit_forward.1
$region0: #{vit_forward.1}
  #allocation0 [shape = 'u32[]', space=smem, size = 0x4, offset = 0x4, fixed_abs, tag = 'smem constant byte address 0x4 - core index']
  #allocation1 [shape = 'u32[72,128]{1,0:T(1,128)}', space=vmem, size = 0x9000, scoped, tag = 'internal scratch']
  %s0 = inlined_call_operand.vmem [shape: f32[10,768], index: 0, kind: input, shape index: {}]
  %s1 = inlined_call_operand.vmem [shape: f32[1184,32], index: 1, kind: input, shape index: {}]
  %s2 = inlined_call_operand.vmem [shape: f32[2,80,128], index: 2, kind: input, shape index: {}]
  %s3 = inlined_call_operand.vmem [shape: f32[10,128], index: 3, kind: output, shape index: {}]
  %s4 = sld [smem:[#allocation0]]
  $region22: #{vit_forward.1} parent=0
    _
  %s6 = ssub.s32 1, %s4
  %s7 = scalar_select 0, %s6, %s4
  // Predicated region
  $region2: #{vit_forward.1} parent=0 // pred_check
    _
  $region3: #{vit_forward.1} parent=0 // pred_check_branch
    %9 = sbr.rel (0) target = $region5
  $region4: #{vit_forward.1} parent=0 // pred_region
    _
  $region5: #{vit_forward.1} parent=0 // pred_fallthru
    _
  // Predicated region
  $region6: #{vit_forward.1} parent=0 // pred_check
    _
  $region7: #{vit_forward.1} parent=0 // pred_check_branch
    %11 = sbr.rel (0) target = $region9
  $region8: #{vit_forward.1} parent=0 // pred_region
    _
  $region9: #{vit_forward.1} parent=0 // pred_fallthru
    _
  // Predicated region
  $region10: #{vit_forward.1} parent=0 // pred_check
    _
  $region11: #{vit_forward.1} parent=0 // pred_check_branch
    %13 = sbr.rel (0) target = $region13
  $region12: #{vit_forward.1} parent=0 // pred_region
    _
  $region13: #{vit_forward.1} parent=0 // pred_fallthru
    _
  %v14 = vld [vmem:[%s1 + $0x340] sm:$0xff]
  %v15 = vld [vmem:[%s1 + $0x348] sm:$0x3]
  %v16 = vld [vmem:[%s1] sm:$0xff]
  %v17 = vld [vmem:[%s1 + $0x8] sm:$0xff]
  %v18 = vld [vmem:[%s1 + $0x10] sm:$0xff]
  %v19 = vld [vmem:[%s1 + $0x18] sm:$0xff]
  %v20 = vld [vmem:[%s1 + $0x20] sm:$0xff]
  %v21 = vld [vmem:[%s1 + $0x28] sm:$0xff]
  %v22 = vld [vmem:[%s1 + $0x30] sm:$0xff]
  %v23 = vld [vmem:[%s1 + $0x38] sm:$0xff]
  %v24 = vld [vmem:[%s1 + $0x40] sm:$0xff]
  %v25 = vld [vmem:[%s1 + $0x48] sm:$0xff]
  %v26 = vld [vmem:[%s1 + $0x50] sm:$0xff]
  %v27 = vld [vmem:[%s1 + $0x58] sm:$0xff]
  %v28 = vld [vmem:[%s1 + $0x60] sm:$0xff]
  %v29 = vld [vmem:[%s1 + $0x68] sm:$0xff]
  %v30 = vld [vmem:[%s1 + $0x70] sm:$0xff]
  %v31 = vld [vmem:[%s1 + $0x78] sm:$0xff]
  %v32 = vld [vmem:[%s1 + $0x80] sm:$0xff]
  %v33 = vld [vmem:[%s1 + $0x88] sm:$0xff]
  %v34 = vld [vmem:[%s1 + $0x90] sm:$0xff]
  %v35 = vld [vmem:[%s1 + $0x98] sm:$0xff]
  %v36 = vld [vmem:[%s1 + $0xa0] sm:$0xff]
  %v37 = vld [vmem:[%s1 + $0xa8] sm:$0xff]
  %v38 = vld [vmem:[%s1 + $0xb0] sm:$0xff]
  %v39 = vld [vmem:[%s1 + $0xb8] sm:$0xff]
  %v40 = vld [vmem:[%s1 + $0xc0] sm:$0xff]
  %v41 = vld [vmem:[%s1 + $0xc8] sm:$0xff]
  %v42 = vld [vmem:[%s1 + $0xd0] sm:$0xff]
  %v43 = vld [vmem:[%s1 + $0xd8] sm:$0xff]
  %v44 = vld [vmem:[%s1 + $0xe0] sm:$0xff]
  %v45 = vld [vmem:[%s1 + $0xe8] sm:$0xff]
  %v46 = vld [vmem:[%s1 + $0xf0] sm:$0xff]
  %v47 = vld [vmem:[%s1 + $0xf8] sm:$0xff]
  %v48 = vld [vmem:[%s1 + $0x100] sm:$0xff]
  %v49 = vld [vmem:[%s1 + $0x108] sm:$0xff]
  %v50 = vld [vmem:[%s1 + $0x110] sm:$0xff]
  %v51 = vld [vmem:[%s1 + $0x118] sm:$0xff]
  %v52 = vld [vmem:[%s1 + $0x120] sm:$0xff]
  %v53 = vld [vmem:[%s1 + $0x128] sm:$0xff]
  %v54 = vld [vmem:[%s1 + $0x130] sm:$0xff]
  %v55 = vld [vmem:[%s1 + $0x138] sm:$0xff]
  %v56 = vld [vmem:[%s1 + $0x140] sm:$0xff]
  %v57 = vld [vmem:[%s1 + $0x148] sm:$0xff]
  %v58 = vld [vmem:[%s1 + $0x150] sm:$0xff]
  %v59 = vld [vmem:[%s1 + $0x158] sm:$0xff]
  %v60 = vld [vmem:[%s1 + $0x160] sm:$0xff]
  %v61 = vld [vmem:[%s1 + $0x168] sm:$0xff]
  %v62 = vld [vmem:[%s1 + $0x170] sm:$0xff]
  %v63 = vld [vmem:[%s1 + $0x178] sm:$0xff]
  %v64 = vld [vmem:[%s1 + $0x180] sm:$0xff]
  %v65 = vld [vmem:[%s1 + $0x188] sm:$0xff]
  %v66 = vld [vmem:[%s1 + $0x190] sm:$0xff]
  %v67 = vld [vmem:[%s1 + $0x198] sm:$0xff]
  %v68 = vld [vmem:[%s1 + $0x1a0] sm:$0xff]
  %v69 = vld [vmem:[%s1 + $0x1a8] sm:$0xff]
  %v70 = vld [vmem:[%s1 + $0x1b0] sm:$0xff]
  %v71 = vld [vmem:[%s1 + $0x1b8] sm:$0xff]
  %v72 = vld [vmem:[%s1 + $0x1c0] sm:$0xff]
  %v73 = vld [vmem:[%s1 + $0x1c8] sm:$0xff]
  %v74 = vld [vmem:[%s1 + $0x1d0] sm:$0xff]
  %v75 = vld [vmem:[%s1 + $0x1d8] sm:$0xff]
  %v76 = vld [vmem:[%s1 + $0x1e0] sm:$0xff]
  %v77 = vld [vmem:[%s1 + $0x1e8] sm:$0xff]
  %v78 = vld [vmem:[%s1 + $0x1f0] sm:$0xff]
  %v79 = vld [vmem:[%s1 + $0x1f8] sm:$0xff]
  %v80 = vld [vmem:[%s1 + $0x200] sm:$0xff]
  %v81 = vld [vmem:[%s1 + $0x208] sm:$0xff]
  %v82 = vld [vmem:[%s1 + $0x210] sm:$0xff]
  %v83 = vld [vmem:[%s1 + $0x218] sm:$0xff]
  %v84 = vld [vmem:[%s1 + $0x220] sm:$0xff]
  %v85 = vld [vmem:[%s1 + $0x228] sm:$0xff]
  %v86 = vld [vmem:[%s1 + $0x230] sm:$0xff]
  %v87 = vld [vmem:[%s1 + $0x238] sm:$0xff]
  %v88 = vld [vmem:[%s1 + $0x240] sm:$0xff]
  %v89 = vld [vmem:[%s1 + $0x248] sm:$0xff]
  %v90 = vld [vmem:[%s1 + $0x250] sm:$0xff]
  %v91 = vld [vmem:[%s1 + $0x258] sm:$0xff]
  %v92 = vld [vmem:[%s1 + $0x260] sm:$0xff]
  %v93 = vld [vmem:[%s1 + $0x268] sm:$0xff]
  %v94 = vld [vmem:[%s1 + $0x270] sm:$0xff]
  %v95 = vld [vmem:[%s1 + $0x278] sm:$0xff]
  %v96 = vld [vmem:[%s1 + $0x280] sm:$0xff]
  %v97 = vld [vmem:[%s1 + $0x288] sm:$0xff]
  %v98 = vld [vmem:[%s1 + $0x290] sm:$0xff]
  %v99 = vld [vmem:[%s1 + $0x298] sm:$0xff]
  %v100 = vld [vmem:[%s1 + $0x2a0] sm:$0xff]
  %v101 = vld [vmem:[%s1 + $0x2a8] sm:$0xff]
  %v102 = vld [vmem:[%s1 + $0x2b0] sm:$0xff]
  %v103 = vld [vmem:[%s1 + $0x2b8] sm:$0xff]
  %v104 = vld [vmem:[%s1 + $0x2c0] sm:$0xff]
  %v105 = vld [vmem:[%s1 + $0x2c8] sm:$0xff]
  %v106 = vld [vmem:[%s1 + $0x2d0] sm:$0xff]
  %v107 = vld [vmem:[%s1 + $0x2d8] sm:$0xff]
  %v108 = vld [vmem:[%s1 + $0x2e0] sm:$0xff]
  %v109 = vld [vmem:[%s1 + $0x2e8] sm:$0xff]
  %v110 = vld [vmem:[%s1 + $0x2f0] sm:$0xff]
  %v111 = vld [vmem:[%s1 + $0x2f8] sm:$0xff]
  %v112 = vld [vmem:[%s1 + $0x300] sm:$0xff]
  %v113 = vld [vmem:[%s1 + $0x308] sm:$0x3]
  %v114 = vld [vmem:[%s0] sm:$0xff]
  %v115 = vld [vmem:[%s0 + $0x8] sm:$0xff]
  %v116 = vld [vmem:[%s0 + $0x10] sm:$0xff]
  %v117 = vld [vmem:[%s0 + $0x18] sm:$0xff]
  %v118 = vld [vmem:[%s0 + $0x20] sm:$0xff]
  %v119 = vld [vmem:[%s0 + $0x28] sm:$0xff]
  %v120 = vld [vmem:[%s0 + $0x30] sm:$0x3]
  %v121 = vld [vmem:[%s0 + $0x38] sm:$0x3]
  %v122 = vld [vmem:[%s0 + $0x40] sm:$0x3]
  %v123 = vld [vmem:[%s0 + $0x48] sm:$0x3]
  %v124 = vld [vmem:[%s0 + $0x50] sm:$0x3]
  %v125 = vld [vmem:[%s0 + $0x58] sm:$0x3]
  %126 = vmatpush.msra.mxu0 %v31
  %127 = vmatpush.msra.mxu0 %v30
  %128 = vmatpush.msra.mxu0 %v29
  %129 = vmatpush.msra.mxu0 %v28
  %130 = vmatpush.msra.mxu0 %v27
  %131 = vmatpush.msra.mxu0 %v26
  %132 = vmatpush.msra.mxu0 %v25
  %133 = vmatpush.msra.mxu0 %v24
  %134 = vmatpush.msra.mxu0 %v23
  %135 = vmatpush.msra.mxu0 %v22
  %136 = vmatpush.msra.mxu0 %v21
  %137 = vmatpush.msra.mxu0 %v20
  %138 = vmatpush.msra.mxu0 %v19
  %139 = vmatpush.msra.mxu0 %v18
  %140 = vmatpush.msra.mxu0 %v17
  %141 = vmatpush.msra.mxu0 %v16
  %142 = vmatmul.f32.gmra.mxu0 %v114
  %v143 = vpop.f32.mrf.mxu0
  %v144 = vadd.f32 %v112, %v143
  %145 = vmatmul.f32.gmra.mxu0 %v120
  %v146 = vpop.f32.mrf.mxu0
  %v147 = vadd.f32 %v113, %v146
  %148 = vdwg.mxu0
  %149 = vmatpush.msra.mxu0 %v47
  %150 = vmatpush.msra.mxu0 %v46
  %151 = vmatpush.msra.mxu0 %v45
  %152 = vmatpush.msra.mxu0 %v44
  %153 = vmatpush.msra.mxu0 %v43
  %154 = vmatpush.msra.mxu0 %v42
  %155 = vmatpush.msra.mxu0 %v41
  %156 = vmatpush.msra.mxu0 %v40
  %157 = vmatpush.msra.mxu0 %v39
  %158 = vmatpush.msra.mxu0 %v38
  %159 = vmatpush.msra.mxu0 %v37
  %160 = vmatpush.msra.mxu0 %v36
  %161 = vmatpush.msra.mxu0 %v35
  %162 = vmatpush.msra.mxu0 %v34
  %163 = vmatpush.msra.mxu0 %v33
  %164 = vmatpush.msra.mxu0 %v32
  %165 = vmatmul.f32.gmra.mxu0 %v115
  %v166 = vpop.f32.mrf.mxu0
  %v167 = vadd.f32 %v144, %v166
  %168 = vmatmul.f32.gmra.mxu0 %v121
  %v169 = vpop.f32.mrf.mxu0
  %v170 = vadd.f32 %v147, %v169
  %171 = vdwg.mxu0
  %172 = vmatpush.msra.mxu0 %v63
  %173 = vmatpush.msra.mxu0 %v62
  %174 = vmatpush.msra.mxu0 %v61
  %175 = vmatpush.msra.mxu0 %v60
  %176 = vmatpush.msra.mxu0 %v59
  %177 = vmatpush.msra.mxu0 %v58
  %178 = vmatpush.msra.mxu0 %v57
  %179 = vmatpush.msra.mxu0 %v56
  %180 = vmatpush.msra.mxu0 %v55
  %181 = vmatpush.msra.mxu0 %v54
  %182 = vmatpush.msra.mxu0 %v53
  %183 = vmatpush.msra.mxu0 %v52
  %184 = vmatpush.msra.mxu0 %v51
  %185 = vmatpush.msra.mxu0 %v50
  %186 = vmatpush.msra.mxu0 %v49
  %187 = vmatpush.msra.mxu0 %v48
  %188 = vmatmul.f32.gmra.mxu0 %v116
  %v189 = vpop.f32.mrf.mxu0
  %v190 = vadd.f32 %v167, %v189
  %191 = vmatmul.f32.gmra.mxu0 %v122
  %v192 = vpop.f32.mrf.mxu0
  %v193 = vadd.f32 %v170, %v192
  %194 = vdwg.mxu0
  %195 = vmatpush.msra.mxu0 %v79
  %196 = vmatpush.msra.mxu0 %v78
  %197 = vmatpush.msra.mxu0 %v77
  %198 = vmatpush.msra.mxu0 %v76
  %199 = vmatpush.msra.mxu0 %v75
  %200 = vmatpush.msra.mxu0 %v74
  %201 = vmatpush.msra.mxu0 %v73
  %202 = vmatpush.msra.mxu0 %v72
  %203 = vmatpush.msra.mxu0 %v71
  %204 = vmatpush.msra.mxu0 %v70
  %205 = vmatpush.msra.mxu0 %v69
  %206 = vmatpush.msra.mxu0 %v68
  %207 = vmatpush.msra.mxu0 %v67
  %208 = vmatpush.msra.mxu0 %v66
  %209 = vmatpush.msra.mxu0 %v65
  %210 = vmatpush.msra.mxu0 %v64
  %211 = vmatmul.f32.gmra.mxu0 %v117
  %v212 = vpop.f32.mrf.mxu0
  %v213 = vadd.f32 %v190, %v212
  %214 = vmatmul.f32.gmra.mxu0 %v123
  %v215 = vpop.f32.mrf.mxu0
  %v216 = vadd.f32 %v193, %v215
  %217 = vdwg.mxu0
  %218 = vmatpush.msra.mxu0 %v95
  %219 = vmatpush.msra.mxu0 %v94
  %220 = vmatpush.msra.mxu0 %v93
  %221 = vmatpush.msra.mxu0 %v92
  %222 = vmatpush.msra.mxu0 %v91
  %223 = vmatpush.msra.mxu0 %v90
  %224 = vmatpush.msra.mxu0 %v89
  %225 = vmatpush.msra.mxu0 %v88
  %226 = vmatpush.msra.mxu0 %v87
  %227 = vmatpush.msra.mxu0 %v86
  %228 = vmatpush.msra.mxu0 %v85
  %229 = vmatpush.msra.mxu0 %v84
  %230 = vmatpush.msra.mxu0 %v83
  %231 = vmatpush.msra.mxu0 %v82
  %232 = vmatpush.msra.mxu0 %v81
  %233 = vmatpush.msra.mxu0 %v80
  %234 = vmatmul.f32.gmra.mxu0 %v118
  %v235 = vpop.f32.mrf.mxu0
  %v236 = vadd.f32 %v213, %v235
  %237 = vmatmul.f32.gmra.mxu0 %v124
  %v238 = vpop.f32.mrf.mxu0
  %v239 = vadd.f32 %v216, %v238
  %240 = vdwg.mxu0
  %241 = vmatpush.msra.mxu0 %v111
  %242 = vmatpush.msra.mxu0 %v110
  %243 = vmatpush.msra.mxu0 %v109
  %244 = vmatpush.msra.mxu0 %v108
  %245 = vmatpush.msra.mxu0 %v107
  %246 = vmatpush.msra.mxu0 %v106
  %247 = vmatpush.msra.mxu0 %v105
  %248 = vmatpush.msra.mxu0 %v104
  %249 = vmatpush.msra.mxu0 %v103
  %250 = vmatpush.msra.mxu0 %v102
  %251 = vmatpush.msra.mxu0 %v101
  %252 = vmatpush.msra.mxu0 %v100
  %253 = vmatpush.msra.mxu0 %v99
  %254 = vmatpush.msra.mxu0 %v98
  %255 = vmatpush.msra.mxu0 %v97
  %256 = vmatpush.msra.mxu0 %v96
  %257 = vmatmul.f32.gmra.mxu0 %v119
  %v258 = vpop.f32.mrf.mxu0
  %v259 = vadd.f32 %v236, %v258
  %260 = vmatmul.f32.gmra.mxu0 %v125
  %v261 = vpop.f32.mrf.mxu0
  %v262 = vadd.f32 %v239, %v261
  %263 = vdwg.mxu0
  %v264 = vld [vmem:[%s1 + $0x350] sm:$0x1]
  %v265 = vld [vmem:[%s1 + $0x351] sm:$0x1]
  %vm266 = vcmask 261120
  %v267 = vsel %vm266, %v259, 0.0
  %268 = vadd.xlane.f32.xlu0 %v267
  %v269 = vpop.xlane.xlu0 %268
  %vm270 = vcmask 254976
  %v271 = vsel %vm270, %v262, 0.0
  %272 = vadd.xlane.f32.xlu0 %v271
  %v273 = vpop.xlane.xlu0 %272
  %v274 = vrcp.pop 32.0
  %v275 = vmul.f32 32.0, %v274
  %v276 = vsub.f32 1.0, %v275
  %v277 = vmul.f32 %v274, %v276
  %v278 = vadd.f32 %v274, %v277
  %vm279 = vweird.f32 %v274
  %v280 = vsel %vm279, %v274, %v278
  %v281 = vmul.f32 %v269, %v280
  %v282 = vmul.f32 %v273, %v280
  %v283 = vmul.f32 %v259, %v259
  %v284 = vmul.f32 %v262, %v262
  %v285 = vsel %vm266, %v283, 0.0
  %286 = vadd.xlane.f32.xlu0 %v285
  %v287 = vpop.xlane.xlu0 %286
  %v288 = vsel %vm270, %v284, 0.0
  %289 = vadd.xlane.f32.xlu0 %v288
  %v290 = vpop.xlane.xlu0 %289
  %v291 = vmul.f32 %v287, %v280
  %v292 = vmul.f32 %v290, %v280
  %v293 = vmul.f32 %v281, %v281
  %v294 = vmul.f32 %v282, %v282
  %v295 = vsub.f32 %v291, %v293
  %v296 = vsub.f32 %v292, %v294
  %v297 = vsub.f32 %v259, %v281
  %v298 = vsub.f32 %v262, %v282
  %v299 = vadd.f32 %v295, 1e-06
  %v300 = vadd.f32 %v296, 1e-06
  %v301 = vrsqrt.pop %v299
  %v302 = vmul.f32 %v301, %v299
  %v303 = vmul.f32 %v302, %v301
  %v304 = vmul.f32 0.5, %v303
  %v305 = vsub.f32 1.5, %v304
  %v306 = vmul.f32 %v301, %v305
  %vm307 = vweird.f32 %v299
  %vm308 = vweird.f32 %v301
  %vm309 = vmor %vm307, %vm308
  %v310 = vsel %vm309, %v301, %v306
  %v311 = vrsqrt.pop %v300
  %v312 = vmul.f32 %v311, %v300
  %v313 = vmul.f32 %v312, %v311
  %v314 = vmul.f32 0.5, %v313
  %v315 = vsub.f32 1.5, %v314
  %v316 = vmul.f32 %v311, %v315
  %vm317 = vweird.f32 %v300
  %vm318 = vweird.f32 %v311
  %vm319 = vmor %vm317, %vm318
  %v320 = vsel %vm319, %v311, %v316
  %v321 = vmul.f32 %v297, %v310
  %v322 = vmul.f32 %v298, %v320
  %v323 = vperm.slane %v264, 0
  %v324 = vmul.f32 %v321, %v323
  %v325 = vmul.f32 %v322, %v323
  %v326 = vperm.slane %v265, 0
  %v327 = vadd.f32 %v324, %v326
  %v328 = vadd.f32 %v325, %v326
  %v329 = vld [vmem:[%s2] sm:$0xff]
  %v330 = vld [vmem:[%s2 + $0x8] sm:$0xff]
  %v331 = vld [vmem:[%s2 + $0x10] sm:$0xff]
  %v332 = vld [vmem:[%s2 + $0x18] sm:$0xff]
  %v333 = vld [vmem:[%s2 + $0x20] sm:$0x1]
  %v334 = vperm.slane %v333, 0
  %v336 = vsel %vm266, %v327, 0
  %v339 = vsel %vm266, %v328, 0
  %341 = vmatpush.msra.mxu0 0.0
  %342 = vmatpush.msra.mxu0 0.0
  %343 = vmatpush.msra.mxu0 0.0
  %344 = vmatpush.msra.mxu0 0.0
  %345 = vmatpush.msra.mxu0 0.0
  %346 = vmatpush.msra.mxu0 0.0
  %347 = vmatpush.msra.mxu0 0.0
  %348 = vmatpush.msra.mxu0 0.0
  %349 = vmatpush.msra.mxu0 0.0
  %350 = vmatpush.msra.mxu0 0.0
  %351 = vmatpush.msra.mxu0 0.0
  %352 = vmatpush.msra.mxu0 0.0
  %353 = vmatpush.msra.mxu0 %v332
  %354 = vmatpush.msra.mxu0 %v331
  %355 = vmatpush.msra.mxu0 %v330
  %356 = vmatpush.msra.mxu0 %v329
  %357 = vmatmul.f32.gmra.mxu0 %v336
  %v358 = vpop.f32.mrf.mxu0
  %v359 = vadd.f32 %v334, %v358
  %360 = vmatmul.f32.gmra.mxu0 %v339
  %v361 = vpop.f32.mrf.mxu0
  %v362 = vadd.f32 %v334, %v361
  %363 = vdwg.mxu0
  %366 = vrot.lane.b32.xlu0 %v359, 96
  %v367 = vpop.permute.xlu0 %366
  %368 = vrot.lane.b32.xlu0 %v362, 96
  %v369 = vpop.permute.xlu0 %368
  %vm370 = vcmask 64512
  %v371 = vsel %vm370, %v359, 0
  %v373 = vsel %vm370, %v362, 0
  %v375 = vsel %vm370, %v367, 0
  %v377 = vsel %vm370, %v369, 0
  %379 = vmatpush.xpose.msra.mxu0 0.0
  %380 = vmatpush.xpose.msra.mxu0 0.0
  %381 = vmatpush.xpose.msra.mxu0 0.0
  %382 = vmatpush.xpose.msra.mxu0 0.0
  %383 = vmatpush.xpose.msra.mxu0 0.0
  %384 = vmatpush.xpose.msra.mxu0 0.0
  %385 = vmatpush.xpose.msra.mxu0 0.0
  %386 = vmatpush.xpose.msra.mxu0 0.0
  %387 = vmatpush.xpose.msra.mxu0 0.0
  %388 = vmatpush.xpose.msra.mxu0 0.0
  %389 = vmatpush.xpose.msra.mxu0 0.0
  %390 = vmatpush.xpose.msra.mxu0 0.0
  %391 = vmatpush.xpose.msra.mxu0 0.0
  %392 = vmatpush.xpose.msra.mxu0 0.0
  %393 = vmatpush.xpose.msra.mxu0 %v377
  %394 = vmatpush.xpose.msra.mxu0 %v375
  %395 = vmatmul.f32.gmra.mxu0 %v371
  %v396 = vpop.f32.mrf.mxu0
  %v397 = vadd.f32 %v14, %v396
  %398 = vmatmul.f32.gmra.mxu0 %v373
  %v399 = vpop.f32.mrf.mxu0
  %v400 = vadd.f32 %v15, %v399
  %401 = vdwg.mxu0
  %vm402 = vcmask 80896
  %v403 = vsel %vm402, %v397, -inf
  %404 = vmax.xlane.f32.xlu0 %v403
  %v405 = vpop.xlane.xlu0 %404
  %vm406 = vcmask 74752
  %v407 = vsel %vm406, %v400, -inf
  %408 = vmax.xlane.f32.xlu0 %v407
  %v409 = vpop.xlane.xlu0 %408
  %v410 = vsub.f32 %v397, %v405
  %v411 = vsub.f32 %v400, %v409
  %v412 = vmul.f32 %v410, 1.442695
  %v413 = vpow.pop %v412
  %v414 = vmul.f32 %v411, 1.442695
  %v415 = vpow.pop %v414
  %v416 = vsel %vm402, %v413, 0.0
  %417 = vadd.xlane.f32.xlu0 %v416
  %v418 = vpop.xlane.xlu0 %417
  %v419 = vsel %vm406, %v415, 0.0
  %420 = vadd.xlane.f32.xlu0 %v419
  %v421 = vpop.xlane.xlu0 %420
  %v422 = vrcp.pop %v418
  %v423 = vrcp.pop %v421
  %v424 = vmul.f32 %v413, %v422
  %v425 = vmul.f32 %v415, %v423
  %426 = vrot.lane.b32.xlu0 %v359, 64
  %v427 = vpop.permute.xlu0 %426
  %428 = vrot.lane.b32.xlu0 %v362, 64
  %v429 = vpop.permute.xlu0 %428
  %v432 = vsel %vm402, %v424, 0
  %v435 = vsel %vm402, %v425, 0
  %vm437 = vcmask 1041408
  %v438 = vsel %vm437, %v429, 0
  %440 = vmatpush.msra.mxu0 0.0
  %441 = vmatpush.msra.mxu0 0.0
  %442 = vmatpush.msra.mxu0 0.0
  %443 = vmatpush.msra.mxu0 0.0
  %444 = vmatpush.msra.mxu0 0.0
  %445 = vmatpush.msra.mxu0 0.0
  %446 = vmatpush.msra.mxu0 0.0
  %447 = vmatpush.msra.mxu0 0.0
  %448 = vmatpush.msra.mxu0 0.0
  %449 = vmatpush.msra.mxu0 0.0
  %450 = vmatpush.msra.mxu0 0.0
  %451 = vmatpush.msra.mxu0 0.0
  %452 = vmatpush.msra.mxu0 0.0
  %453 = vmatpush.msra.mxu0 0.0
  %454 = vmatpush.msra.mxu0 %v438
  %455 = vmatpush.msra.mxu0 %v427
  %456 = vmatmul.f32.gmra.mxu0 %v432
  %v457 = vpop.f32.mrf.mxu0
  %v458 = vadd.f32 0.0, %v457
  %459 = vmatmul.f32.gmra.mxu0 %v435
  %v460 = vpop.f32.mrf.mxu0
  %v461 = vadd.f32 0.0, %v460
  %462 = vdwg.mxu0
  %463 = vrot.lane.b32.xlu0 %v359, 120
  %v464 = vpop.permute.xlu0 %463
  %465 = vrot.lane.b32.xlu0 %v362, 120
  %v466 = vpop.permute.xlu0 %465
  %467 = vrot.lane.b32.xlu0 %v359, 88
  %v468 = vpop.permute.xlu0 %467
  %469 = vrot.lane.b32.xlu0 %v362, 88
  %v470 = vpop.permute.xlu0 %469
  %v471 = vsel %vm370, %v464, 0
  %v473 = vsel %vm370, %v466, 0
  %v475 = vsel %vm370, %v468, 0
  %v477 = vsel %vm370, %v470, 0
  %479 = vmatpush.xpose.msra.mxu0 0.0
  %480 = vmatpush.xpose.msra.mxu0 0.0
  %481 = vmatpush.xpose.msra.mxu0 0.0
  %482 = vmatpush.xpose.msra.mxu0 0.0
  %483 = vmatpush.xpose.msra.mxu0 0.0
  %484 = vmatpush.xpose.msra.mxu0 0.0
  %485 = vmatpush.xpose.msra.mxu0 0.0
  %486 = vmatpush.xpose.msra.mxu0 0.0
  %487 = vmatpush.xpose.msra.mxu0 0.0
  %488 = vmatpush.xpose.msra.mxu0 0.0
  %489 = vmatpush.xpose.msra.mxu0 0.0
  %490 = vmatpush.xpose.msra.mxu0 0.0
  %491 = vmatpush.xpose.msra.mxu0 0.0
  %492 = vmatpush.xpose.msra.mxu0 0.0
  %493 = vmatpush.xpose.msra.mxu0 %v477
  %494 = vmatpush.xpose.msra.mxu0 %v475
  %495 = vmatmul.f32.gmra.mxu0 %v471
  %v496 = vpop.f32.mrf.mxu0
  %v497 = vadd.f32 %v14, %v496
  %498 = vmatmul.f32.gmra.mxu0 %v473
  %v499 = vpop.f32.mrf.mxu0
  %v500 = vadd.f32 %v15, %v499
  %501 = vdwg.mxu0
  %v502 = vsel %vm402, %v497, -inf
  %503 = vmax.xlane.f32.xlu0 %v502
  %v504 = vpop.xlane.xlu0 %503
  %v505 = vsel %vm406, %v500, -inf
  %506 = vmax.xlane.f32.xlu0 %v505
  %v507 = vpop.xlane.xlu0 %506
  %v508 = vsub.f32 %v497, %v504
  %v509 = vsub.f32 %v500, %v507
  %v510 = vmul.f32 %v508, 1.442695
  %v511 = vpow.pop %v510
  %v512 = vmul.f32 %v509, 1.442695
  %v513 = vpow.pop %v512
  %v514 = vsel %vm402, %v511, 0.0
  %515 = vadd.xlane.f32.xlu0 %v514
  %v516 = vpop.xlane.xlu0 %515
  %v517 = vsel %vm406, %v513, 0.0
  %518 = vadd.xlane.f32.xlu0 %v517
  %v519 = vpop.xlane.xlu0 %518
  %v520 = vrcp.pop %v516
  %v521 = vrcp.pop %v519
  %v522 = vmul.f32 %v511, %v520
  %v523 = vmul.f32 %v513, %v521
  %524 = vrot.lane.b32.xlu0 %v359, 56
  %v525 = vpop.permute.xlu0 %524
  %526 = vrot.lane.b32.xlu0 %v362, 56
  %v527 = vpop.permute.xlu0 %526
  %v530 = vsel %vm402, %v522, 0
  %v533 = vsel %vm402, %v523, 0
  %v535 = vsel %vm437, %v527, 0
  %537 = vmatpush.msra.mxu0 0.0
  %538 = vmatpush.msra.mxu0 0.0
  %539 = vmatpush.msra.mxu0 0.0
  %540 = vmatpush.msra.mxu0 0.0
  %541 = vmatpush.msra.mxu0 0.0
  %542 = vmatpush.msra.mxu0 0.0
  %543 = vmatpush.msra.mxu0 0.0
  %544 = vmatpush.msra.mxu0 0.0
  %545 = vmatpush.msra.mxu0 0.0
  %546 = vmatpush.msra.mxu0 0.0
  %547 = vmatpush.msra.mxu0 0.0
  %548 = vmatpush.msra.mxu0 0.0
  %549 = vmatpush.msra.mxu0 0.0
  %550 = vmatpush.msra.mxu0 0.0
  %551 = vmatpush.msra.mxu0 %v535
  %552 = vmatpush.msra.mxu0 %v525
  %553 = vmatmul.f32.gmra.mxu0 %v530
  %v554 = vpop.f32.mrf.mxu0
  %v555 = vadd.f32 0.0, %v554
  %556 = vmatmul.f32.gmra.mxu0 %v533
  %v557 = vpop.f32.mrf.mxu0
  %v558 = vadd.f32 0.0, %v557
  %559 = vdwg.mxu0
  %560 = vrot.lane.b32.xlu0 %v359, 112
  %v561 = vpop.permute.xlu0 %560
  %562 = vrot.lane.b32.xlu0 %v362, 112
  %v563 = vpop.permute.xlu0 %562
  %564 = vrot.lane.b32.xlu0 %v359, 80
  %v565 = vpop.permute.xlu0 %564
  %566 = vrot.lane.b32.xlu0 %v362, 80
  %v567 = vpop.permute.xlu0 %566
  %v568 = vsel %vm370, %v561, 0
  %v570 = vsel %vm370, %v563, 0
  %v572 = vsel %vm370, %v565, 0
  %v574 = vsel %vm370, %v567, 0
  %576 = vmatpush.xpose.msra.mxu0 0.0
  %577 = vmatpush.xpose.msra.mxu0 0.0
  %578 = vmatpush.xpose.msra.mxu0 0.0
  %579 = vmatpush.xpose.msra.mxu0 0.0
  %580 = vmatpush.xpose.msra.mxu0 0.0
  %581 = vmatpush.xpose.msra.mxu0 0.0
  %582 = vmatpush.xpose.msra.mxu0 0.0
  %583 = vmatpush.xpose.msra.mxu0 0.0
  %584 = vmatpush.xpose.msra.mxu0 0.0
  %585 = vmatpush.xpose.msra.mxu0 0.0
  %586 = vmatpush.xpose.msra.mxu0 0.0
  %587 = vmatpush.xpose.msra.mxu0 0.0
  %588 = vmatpush.xpose.msra.mxu0 0.0
  %589 = vmatpush.xpose.msra.mxu0 0.0
  %590 = vmatpush.xpose.msra.mxu0 %v574
  %591 = vmatpush.xpose.msra.mxu0 %v572
  %592 = vmatmul.f32.gmra.mxu0 %v568
  %v593 = vpop.f32.mrf.mxu0
  %v594 = vadd.f32 %v14, %v593
  %595 = vmatmul.f32.gmra.mxu0 %v570
  %v596 = vpop.f32.mrf.mxu0
  %v597 = vadd.f32 %v15, %v596
  %598 = vdwg.mxu0
  %v599 = vsel %vm402, %v594, -inf
  %600 = vmax.xlane.f32.xlu0 %v599
  %v601 = vpop.xlane.xlu0 %600
  %v602 = vsel %vm406, %v597, -inf
  %603 = vmax.xlane.f32.xlu0 %v602
  %v604 = vpop.xlane.xlu0 %603
  %v605 = vsub.f32 %v594, %v601
  %v606 = vsub.f32 %v597, %v604
  %v607 = vmul.f32 %v605, 1.442695
  %v608 = vpow.pop %v607
  %v609 = vmul.f32 %v606, 1.442695
  %v610 = vpow.pop %v609
  %v611 = vsel %vm402, %v608, 0.0
  %612 = vadd.xlane.f32.xlu0 %v611
  %v613 = vpop.xlane.xlu0 %612
  %v614 = vsel %vm406, %v610, 0.0
  %615 = vadd.xlane.f32.xlu0 %v614
  %v616 = vpop.xlane.xlu0 %615
  %v617 = vrcp.pop %v613
  %v618 = vrcp.pop %v616
  %v619 = vmul.f32 %v608, %v617
  %v620 = vmul.f32 %v610, %v618
  %621 = vrot.lane.b32.xlu0 %v359, 48
  %v622 = vpop.permute.xlu0 %621
  %623 = vrot.lane.b32.xlu0 %v362, 48
  %v624 = vpop.permute.xlu0 %623
  %v627 = vsel %vm402, %v619, 0
  %v630 = vsel %vm402, %v620, 0
  %v632 = vsel %vm437, %v624, 0
  %634 = vmatpush.msra.mxu0 0.0
  %635 = vmatpush.msra.mxu0 0.0
  %636 = vmatpush.msra.mxu0 0.0
  %637 = vmatpush.msra.mxu0 0.0
  %638 = vmatpush.msra.mxu0 0.0
  %639 = vmatpush.msra.mxu0 0.0
  %640 = vmatpush.msra.mxu0 0.0
  %641 = vmatpush.msra.mxu0 0.0
  %642 = vmatpush.msra.mxu0 0.0
  %643 = vmatpush.msra.mxu0 0.0
  %644 = vmatpush.msra.mxu0 0.0
  %645 = vmatpush.msra.mxu0 0.0
  %646 = vmatpush.msra.mxu0 0.0
  %647 = vmatpush.msra.mxu0 0.0
  %648 = vmatpush.msra.mxu0 %v632
  %649 = vmatpush.msra.mxu0 %v622
  %650 = vmatmul.f32.gmra.mxu0 %v627
  %v651 = vpop.f32.mrf.mxu0
  %v652 = vadd.f32 0.0, %v651
  %653 = vmatmul.f32.gmra.mxu0 %v630
  %v654 = vpop.f32.mrf.mxu0
  %v655 = vadd.f32 0.0, %v654
  %656 = vdwg.mxu0
  %657 = vrot.lane.b32.xlu0 %v359, 104
  %v658 = vpop.permute.xlu0 %657
  %659 = vrot.lane.b32.xlu0 %v362, 104
  %v660 = vpop.permute.xlu0 %659
  %661 = vrot.lane.b32.xlu0 %v359, 72
  %v662 = vpop.permute.xlu0 %661
  %663 = vrot.lane.b32.xlu0 %v362, 72
  %v664 = vpop.permute.xlu0 %663
  %v665 = vsel %vm370, %v658, 0
  %v667 = vsel %vm370, %v660, 0
  %v669 = vsel %vm370, %v662, 0
  %v671 = vsel %vm370, %v664, 0
  %673 = vmatpush.xpose.msra.mxu0 0.0
  %674 = vmatpush.xpose.msra.mxu0 0.0
  %675 = vmatpush.xpose.msra.mxu0 0.0
  %676 = vmatpush.xpose.msra.mxu0 0.0
  %677 = vmatpush.xpose.msra.mxu0 0.0
  %678 = vmatpush.xpose.msra.mxu0 0.0
  %679 = vmatpush.xpose.msra.mxu0 0.0
  %680 = vmatpush.xpose.msra.mxu0 0.0
  %681 = vmatpush.xpose.msra.mxu0 0.0
  %682 = vmatpush.xpose.msra.mxu0 0.0
  %683 = vmatpush.xpose.msra.mxu0 0.0
  %684 = vmatpush.xpose.msra.mxu0 0.0
  %685 = vmatpush.xpose.msra.mxu0 0.0
  %686 = vmatpush.xpose.msra.mxu0 0.0
  %687 = vmatpush.xpose.msra.mxu0 %v671
  %688 = vmatpush.xpose.msra.mxu0 %v669
  %689 = vmatmul.f32.gmra.mxu0 %v665
  %v690 = vpop.f32.mrf.mxu0
  %v691 = vadd.f32 %v14, %v690
  %692 = vmatmul.f32.gmra.mxu0 %v667
  %v693 = vpop.f32.mrf.mxu0
  %v694 = vadd.f32 %v15, %v693
  %695 = vdwg.mxu0
  %v696 = vsel %vm402, %v691, -inf
  %697 = vmax.xlane.f32.xlu0 %v696
  %v698 = vpop.xlane.xlu0 %697
  %v699 = vsel %vm406, %v694, -inf
  %700 = vmax.xlane.f32.xlu0 %v699
  %v701 = vpop.xlane.xlu0 %700
  %v702 = vsub.f32 %v691, %v698
  %v703 = vsub.f32 %v694, %v701
  %v704 = vmul.f32 %v702, 1.442695
  %v705 = vpow.pop %v704
  %v706 = vmul.f32 %v703, 1.442695
  %v707 = vpow.pop %v706
  %v708 = vsel %vm402, %v705, 0.0
  %709 = vadd.xlane.f32.xlu0 %v708
  %v710 = vpop.xlane.xlu0 %709
  %v711 = vsel %vm406, %v707, 0.0
  %712 = vadd.xlane.f32.xlu0 %v711
  %v713 = vpop.xlane.xlu0 %712
  %v714 = vrcp.pop %v710
  %v715 = vrcp.pop %v713
  %v716 = vmul.f32 %v705, %v714
  %v717 = vmul.f32 %v707, %v715
  %718 = vrot.lane.b32.xlu0 %v359, 40
  %v719 = vpop.permute.xlu0 %718
  %720 = vrot.lane.b32.xlu0 %v362, 40
  %v721 = vpop.permute.xlu0 %720
  %v724 = vsel %vm402, %v716, 0
  %v727 = vsel %vm402, %v717, 0
  %v729 = vsel %vm437, %v721, 0
  %731 = vmatpush.msra.mxu0 0.0
  %732 = vmatpush.msra.mxu0 0.0
  %733 = vmatpush.msra.mxu0 0.0
  %734 = vmatpush.msra.mxu0 0.0
  %735 = vmatpush.msra.mxu0 0.0
  %736 = vmatpush.msra.mxu0 0.0
  %737 = vmatpush.msra.mxu0 0.0
  %738 = vmatpush.msra.mxu0 0.0
  %739 = vmatpush.msra.mxu0 0.0
  %740 = vmatpush.msra.mxu0 0.0
  %741 = vmatpush.msra.mxu0 0.0
  %742 = vmatpush.msra.mxu0 0.0
  %743 = vmatpush.msra.mxu0 0.0
  %744 = vmatpush.msra.mxu0 0.0
  %745 = vmatpush.msra.mxu0 %v729
  %746 = vmatpush.msra.mxu0 %v719
  %747 = vmatmul.f32.gmra.mxu0 %v724
  %v748 = vpop.f32.mrf.mxu0
  %v749 = vadd.f32 0.0, %v748
  %750 = vmatmul.f32.gmra.mxu0 %v727
  %v751 = vpop.f32.mrf.mxu0
  %v752 = vadd.f32 0.0, %v751
  %753 = vdwg.mxu0
  %756 = vrot.lane.b32.xlu0 %v555, 8
  %v757 = vpop.permute.xlu0 %756
  %758 = vrot.lane.b32.xlu0 %v558, 8
  %v759 = vpop.permute.xlu0 %758
  %764 = vrot.lane.b32.xlu0 %v652, 16
  %v765 = vpop.permute.xlu0 %764
  %766 = vrot.lane.b32.xlu0 %v655, 16
  %v767 = vpop.permute.xlu0 %766
  %772 = vrot.lane.b32.xlu0 %v749, 24
  %v773 = vpop.permute.xlu0 %772
  %774 = vrot.lane.b32.xlu0 %v752, 24
  %v775 = vpop.permute.xlu0 %774
  %v778 = vsel %vm370, %v458, %v757
  %v779 = vsel %vm370, %v461, %v759
  %vm780 = vcmask 130048
  %v781 = vsel %vm780, %v778, %v765
  %v782 = vsel %vm780, %v779, %v767
  %vm783 = vcmask 195584
  %v784 = vsel %vm783, %v781, %v773
  %v785 = vsel %vm783, %v782, %v775
  %v786 = vld [vmem:[%s1 + $0x358] sm:$0xff]
  %v787 = vld [vmem:[%s1 + $0x360] sm:$0xff]
  %v788 = vld [vmem:[%s1 + $0x368] sm:$0xff]
  %v789 = vld [vmem:[%s1 + $0x370] sm:$0xff]
  %v791 = vsel %vm266, %v784, 0
  %v794 = vsel %vm266, %v785, 0
  %796 = vmatpush.msra.mxu0 0.0
  %797 = vmatpush.msra.mxu0 0.0
  %798 = vmatpush.msra.mxu0 0.0
  %799 = vmatpush.msra.mxu0 0.0
  %800 = vmatpush.msra.mxu0 0.0
  %801 = vmatpush.msra.mxu0 0.0
  %802 = vmatpush.msra.mxu0 0.0
  %803 = vmatpush.msra.mxu0 0.0
  %804 = vmatpush.msra.mxu0 0.0
  %805 = vmatpush.msra.mxu0 0.0
  %806 = vmatpush.msra.mxu0 0.0
  %807 = vmatpush.msra.mxu0 0.0
  %808 = vmatpush.msra.mxu0 %v789
  %809 = vmatpush.msra.mxu0 %v788
  %810 = vmatpush.msra.mxu0 %v787
  %811 = vmatpush.msra.mxu0 %v786
  %812 = vmatmul.f32.gmra.mxu0 %v791
  %v813 = vpop.f32.mrf.mxu0
  %v814 = vadd.f32 0.0, %v813
  %815 = vmatmul.f32.gmra.mxu0 %v794
  %v816 = vpop.f32.mrf.mxu0
  %v817 = vadd.f32 0.0, %v816
  %818 = vdwg.mxu0
  %v819 = vadd.f32 %v259, %v814
  %v820 = vadd.f32 %v262, %v817
  %v821 = vld [vmem:[%s1 + $0x352] sm:$0x1]
  %v822 = vperm.slane %v821, 0
  %v823 = vadd.f32 %v819, %v822
  %v824 = vadd.f32 %v820, %v822
  %v825 = vld [vmem:[%s1 + $0x353] sm:$0x1]
  %v826 = vld [vmem:[%s1 + $0x354] sm:$0x1]
  %v827 = vsel %vm266, %v823, 0.0
  %828 = vadd.xlane.f32.xlu0 %v827
  %v829 = vpop.xlane.xlu0 %828
  %v830 = vsel %vm270, %v824, 0.0
  %831 = vadd.xlane.f32.xlu0 %v830
  %v832 = vpop.xlane.xlu0 %831
  %v833 = vmul.f32 %v829, %v280
  %v834 = vmul.f32 %v832, %v280
  %v835 = vmul.f32 %v823, %v823
  %v836 = vmul.f32 %v824, %v824
  %v837 = vsel %vm266, %v835, 0.0
  %838 = vadd.xlane.f32.xlu0 %v837
  %v839 = vpop.xlane.xlu0 %838
  %v840 = vsel %vm270, %v836, 0.0
  %841 = vadd.xlane.f32.xlu0 %v840
  %v842 = vpop.xlane.xlu0 %841
  %v843 = vmul.f32 %v839, %v280
  %v844 = vmul.f32 %v842, %v280
  %v845 = vmul.f32 %v833, %v833
  %v846 = vmul.f32 %v834, %v834
  %v847 = vsub.f32 %v843, %v845
  %v848 = vsub.f32 %v844, %v846
  %v849 = vsub.f32 %v823, %v833
  %v850 = vsub.f32 %v824, %v834
  %v851 = vadd.f32 %v847, 1e-06
  %v852 = vadd.f32 %v848, 1e-06
  %v853 = vrsqrt.pop %v851
  %v854 = vmul.f32 %v853, %v851
  %v855 = vmul.f32 %v854, %v853
  %v856 = vmul.f32 0.5, %v855
  %v857 = vsub.f32 1.5, %v856
  %v858 = vmul.f32 %v853, %v857
  %vm859 = vweird.f32 %v851
  %vm860 = vweird.f32 %v853
  %vm861 = vmor %vm859, %vm860
  %v862 = vsel %vm861, %v853, %v858
  %v863 = vrsqrt.pop %v852
  %v864 = vmul.f32 %v863, %v852
  %v865 = vmul.f32 %v864, %v863
  %v866 = vmul.f32 0.5, %v865
  %v867 = vsub.f32 1.5, %v866
  %v868 = vmul.f32 %v863, %v867
  %vm869 = vweird.f32 %v852
  %vm870 = vweird.f32 %v863
  %vm871 = vmor %vm869, %vm870
  %v872 = vsel %vm871, %v863, %v868
  %v873 = vmul.f32 %v849, %v862
  %v874 = vmul.f32 %v850, %v872
  %v875 = vperm.slane %v825, 0
  %v876 = vmul.f32 %v873, %v875
  %v877 = vmul.f32 %v874, %v875
  %v878 = vperm.slane %v826, 0
  %v879 = vadd.f32 %v876, %v878
  %v880 = vadd.f32 %v877, %v878
  %v881 = vld [vmem:[%s2 + $0x28] sm:$0xff]
  %v882 = vld [vmem:[%s2 + $0x30] sm:$0xff]
  %v883 = vld [vmem:[%s2 + $0x38] sm:$0xff]
  %v884 = vld [vmem:[%s2 + $0x40] sm:$0xff]
  %v885 = vld [vmem:[%s2 + $0x48] sm:$0x1]
  %v886 = vperm.slane %v885, 0
  %v888 = vsel %vm266, %v879, 0
  %v891 = vsel %vm266, %v880, 0
  %893 = vmatpush.msra.mxu0 0.0
  %894 = vmatpush.msra.mxu0 0.0
  %895 = vmatpush.msra.mxu0 0.0
  %896 = vmatpush.msra.mxu0 0.0
  %897 = vmatpush.msra.mxu0 0.0
  %898 = vmatpush.msra.mxu0 0.0
  %899 = vmatpush.msra.mxu0 0.0
  %900 = vmatpush.msra.mxu0 0.0
  %901 = vmatpush.msra.mxu0 0.0
  %902 = vmatpush.msra.mxu0 0.0
  %903 = vmatpush.msra.mxu0 0.0
  %904 = vmatpush.msra.mxu0 0.0
  %905 = vmatpush.msra.mxu0 %v884
  %906 = vmatpush.msra.mxu0 %v883
  %907 = vmatpush.msra.mxu0 %v882
  %908 = vmatpush.msra.mxu0 %v881
  %909 = vmatmul.f32.gmra.mxu0 %v888
  %v910 = vpop.f32.mrf.mxu0
  %v911 = vadd.f32 %v886, %v910
  %912 = vmatmul.f32.gmra.mxu0 %v891
  %v913 = vpop.f32.mrf.mxu0
  %v914 = vadd.f32 %v886, %v913
  %915 = vdwg.mxu0
  %v916 = vmul.f32 %v911, %v911
  %v917 = vmul.f32 %v914, %v914
  %v918 = vmul.f32 %v911, %v916
  %v919 = vmul.f32 %v914, %v917
  %v920 = vmul.f32 %v918, 0.044715
  %v921 = vmul.f32 %v919, 0.044715
  %v922 = vadd.f32 %v911, %v920
  %v923 = vadd.f32 %v914, %v921
  %v924 = vmul.f32 %v922, 0.7978846
  %v925 = vmul.f32 %v923, 0.7978846
  %v926 = vtanh.pop %v924
  %v927 = vtanh.pop %v925
  %v928 = vadd.f32 %v926, 1.0
  %v929 = vadd.f32 %v927, 1.0
  %v930 = vmul.f32 %v928, 0.5
  %v931 = vmul.f32 %v929, 0.5
  %v932 = vmul.f32 %v911, %v930
  %v933 = vmul.f32 %v914, %v931
  %v934 = vld [vmem:[%s1 + $0x378] sm:$0xff]
  %v935 = vld [vmem:[%s1 + $0x380] sm:$0xff]
  %v936 = vld [vmem:[%s1 + $0x388] sm:$0xff]
  %v937 = vld [vmem:[%s1 + $0x390] sm:$0xff]
  %v938 = vld [vmem:[%s1 + $0x398] sm:$0xff]
  %v939 = vld [vmem:[%s1 + $0x3a0] sm:$0xff]
  %v940 = vld [vmem:[%s1 + $0x3a8] sm:$0xff]
  %v941 = vld [vmem:[%s1 + $0x3b0] sm:$0xff]
  %v942 = vld [vmem:[%s1 + $0x3b8] sm:$0xff]
  %v943 = vld [vmem:[%s1 + $0x3c0] sm:$0xff]
  %v944 = vld [vmem:[%s1 + $0x3c8] sm:$0xff]
  %v945 = vld [vmem:[%s1 + $0x3d0] sm:$0xff]
  %v946 = vld [vmem:[%s1 + $0x3d8] sm:$0xff]
  %v947 = vld [vmem:[%s1 + $0x3e0] sm:$0xff]
  %v948 = vld [vmem:[%s1 + $0x3e8] sm:$0xff]
  %v949 = vld [vmem:[%s1 + $0x3f0] sm:$0xff]
  %950 = vmatpush.msra.mxu0 %v949
  %951 = vmatpush.msra.mxu0 %v948
  %952 = vmatpush.msra.mxu0 %v947
  %953 = vmatpush.msra.mxu0 %v946
  %954 = vmatpush.msra.mxu0 %v945
  %955 = vmatpush.msra.mxu0 %v944
  %956 = vmatpush.msra.mxu0 %v943
  %957 = vmatpush.msra.mxu0 %v942
  %958 = vmatpush.msra.mxu0 %v941
  %959 = vmatpush.msra.mxu0 %v940
  %960 = vmatpush.msra.mxu0 %v939
  %961 = vmatpush.msra.mxu0 %v938
  %962 = vmatpush.msra.mxu0 %v937
  %963 = vmatpush.msra.mxu0 %v936
  %964 = vmatpush.msra.mxu0 %v935
  %965 = vmatpush.msra.mxu0 %v934
  %966 = vmatmul.f32.gmra.mxu0 %v932
  %v967 = vpop.f32.mrf.mxu0
  %v968 = vadd.f32 0.0, %v967
  %969 = vmatmul.f32.gmra.mxu0 %v933
  %v970 = vpop.f32.mrf.mxu0
  %v971 = vadd.f32 0.0, %v970
  %972 = vdwg.mxu0
  %v973 = vadd.f32 %v823, %v968
  %v974 = vadd.f32 %v824, %v971
  %v975 = vld [vmem:[%s1 + $0x355] sm:$0x1]
  %v976 = vperm.slane %v975, 0
  %v977 = vadd.f32 %v973, %v976
  %v978 = vadd.f32 %v974, %v976
  %v979 = vld [vmem:[%s1 + $0x3f8] sm:$0x1]
  %v980 = vld [vmem:[%s1 + $0x3f9] sm:$0x1]
  %v981 = vsel %vm266, %v977, 0.0
  %982 = vadd.xlane.f32.xlu0 %v981
  %v983 = vpop.xlane.xlu0 %982
  %v984 = vsel %vm270, %v978, 0.0
  %985 = vadd.xlane.f32.xlu0 %v984
  %v986 = vpop.xlane.xlu0 %985
  %v987 = vmul.f32 %v983, %v280
  %v988 = vmul.f32 %v986, %v280
  %v989 = vmul.f32 %v977, %v977
  %v990 = vmul.f32 %v978, %v978
  %v991 = vsel %vm266, %v989, 0.0
  %992 = vadd.xlane.f32.xlu0 %v991
  %v993 = vpop.xlane.xlu0 %992
  %v994 = vsel %vm270, %v990, 0.0
  %995 = vadd.xlane.f32.xlu0 %v994
  %v996 = vpop.xlane.xlu0 %995
  %v997 = vmul.f32 %v993, %v280
  %v998 = vmul.f32 %v996, %v280
  %v999 = vmul.f32 %v987, %v987
  %v1000 = vmul.f32 %v988, %v988
  %v1001 = vsub.f32 %v997, %v999
  %v1002 = vsub.f32 %v998, %v1000
  %v1003 = vsub.f32 %v977, %v987
  %v1004 = vsub.f32 %v978, %v988
  %v1005 = vadd.f32 %v1001, 1e-06
  %v1006 = vadd.f32 %v1002, 1e-06
  %v1007 = vrsqrt.pop %v1005
  %v1008 = vmul.f32 %v1007, %v1005
  %v1009 = vmul.f32 %v1008, %v1007
  %v1010 = vmul.f32 0.5, %v1009
  %v1011 = vsub.f32 1.5, %v1010
  %v1012 = vmul.f32 %v1007, %v1011
  %vm1013 = vweird.f32 %v1005
  %vm1014 = vweird.f32 %v1007
  %vm1015 = vmor %vm1013, %vm1014
  %v1016 = vsel %vm1015, %v1007, %v1012
  %v1017 = vrsqrt.pop %v1006
  %v1018 = vmul.f32 %v1017, %v1006
  %v1019 = vmul.f32 %v1018, %v1017
  %v1020 = vmul.f32 0.5, %v1019
  %v1021 = vsub.f32 1.5, %v1020
  %v1022 = vmul.f32 %v1017, %v1021
  %vm1023 = vweird.f32 %v1006
  %vm1024 = vweird.f32 %v1017
  %vm1025 = vmor %vm1023, %vm1024
  %v1026 = vsel %vm1025, %v1017, %v1022
  %v1027 = vmul.f32 %v1003, %v1016
  %v1028 = vmul.f32 %v1004, %v1026
  %v1029 = vperm.slane %v979, 0
  %v1030 = vmul.f32 %v1027, %v1029
  %v1031 = vmul.f32 %v1028, %v1029
  %v1032 = vperm.slane %v980, 0
  %v1033 = vadd.f32 %v1030, %v1032
  %v1034 = vadd.f32 %v1031, %v1032
  %s1035 = scalar_lea.vmem %s2, 80
  %v1036 = vld [vmem:[%s1035] sm:$0xff]
  %v1037 = vld [vmem:[%s1035 + $0x8] sm:$0xff]
  %v1038 = vld [vmem:[%s1035 + $0x10] sm:$0xff]
  %v1039 = vld [vmem:[%s1035 + $0x18] sm:$0xff]
  %v1040 = vld [vmem:[%s1035 + $0x20] sm:$0x1]
  %v1041 = vperm.slane %v1040, 0
  %v1043 = vsel %vm266, %v1033, 0
  %v1046 = vsel %vm266, %v1034, 0
  %1048 = vmatpush.msra.mxu0 0.0
  %1049 = vmatpush.msra.mxu0 0.0
  %1050 = vmatpush.msra.mxu0 0.0
  %1051 = vmatpush.msra.mxu0 0.0
  %1052 = vmatpush.msra.mxu0 0.0
  %1053 = vmatpush.msra.mxu0 0.0
  %1054 = vmatpush.msra.mxu0 0.0
  %1055 = vmatpush.msra.mxu0 0.0
  %1056 = vmatpush.msra.mxu0 0.0
  %1057 = vmatpush.msra.mxu0 0.0
  %1058 = vmatpush.msra.mxu0 0.0
  %1059 = vmatpush.msra.mxu0 0.0
  %1060 = vmatpush.msra.mxu0 %v1039
  %1061 = vmatpush.msra.mxu0 %v1038
  %1062 = vmatpush.msra.mxu0 %v1037
  %1063 = vmatpush.msra.mxu0 %v1036
  %1064 = vmatmul.f32.gmra.mxu0 %v1043
  %v1065 = vpop.f32.mrf.mxu0
  %v1066 = vadd.f32 %v1041, %v1065
  %1067 = vmatmul.f32.gmra.mxu0 %v1046
  %v1068 = vpop.f32.mrf.mxu0
  %v1069 = vadd.f32 %v1041, %v1068
  %1070 = vdwg.mxu0
  %1073 = vrot.lane.b32.xlu0 %v1066, 96
  %v1074 = vpop.permute.xlu0 %1073
  %1075 = vrot.lane.b32.xlu0 %v1069, 96
  %v1076 = vpop.permute.xlu0 %1075
  %v1077 = vsel %vm370, %v1066, 0
  %v1079 = vsel %vm370, %v1069, 0
  %v1081 = vsel %vm370, %v1074, 0
  %v1083 = vsel %vm370, %v1076, 0
  %1085 = vmatpush.xpose.msra.mxu0 0.0
  %1086 = vmatpush.xpose.msra.mxu0 0.0
  %1087 = vmatpush.xpose.msra.mxu0 0.0
  %1088 = vmatpush.xpose.msra.mxu0 0.0
  %1089 = vmatpush.xpose.msra.mxu0 0.0
  %1090 = vmatpush.xpose.msra.mxu0 0.0
  %1091 = vmatpush.xpose.msra.mxu0 0.0
  %1092 = vmatpush.xpose.msra.mxu0 0.0
  %1093 = vmatpush.xpose.msra.mxu0 0.0
  %1094 = vmatpush.xpose.msra.mxu0 0.0
  %1095 = vmatpush.xpose.msra.mxu0 0.0
  %1096 = vmatpush.xpose.msra.mxu0 0.0
  %1097 = vmatpush.xpose.msra.mxu0 0.0
  %1098 = vmatpush.xpose.msra.mxu0 0.0
  %1099 = vmatpush.xpose.msra.mxu0 %v1083
  %1100 = vmatpush.xpose.msra.mxu0 %v1081
  %1101 = vmatmul.f32.gmra.mxu0 %v1077
  %v1102 = vpop.f32.mrf.mxu0
  %v1103 = vadd.f32 %v14, %v1102
  %1104 = vmatmul.f32.gmra.mxu0 %v1079
  %v1105 = vpop.f32.mrf.mxu0
  %v1106 = vadd.f32 %v15, %v1105
  %1107 = vdwg.mxu0
  %v1108 = vsel %vm402, %v1103, -inf
  %1109 = vmax.xlane.f32.xlu0 %v1108
  %v1110 = vpop.xlane.xlu0 %1109
  %v1111 = vsel %vm406, %v1106, -inf
  %1112 = vmax.xlane.f32.xlu0 %v1111
  %v1113 = vpop.xlane.xlu0 %1112
  %v1114 = vsub.f32 %v1103, %v1110
  %v1115 = vsub.f32 %v1106, %v1113
  %v1116 = vmul.f32 %v1114, 1.442695
  %v1117 = vpow.pop %v1116
  %v1118 = vmul.f32 %v1115, 1.442695
  %v1119 = vpow.pop %v1118
  %v1120 = vsel %vm402, %v1117, 0.0
  %1121 = vadd.xlane.f32.xlu0 %v1120
  %v1122 = vpop.xlane.xlu0 %1121
  %v1123 = vsel %vm406, %v1119, 0.0
  %1124 = vadd.xlane.f32.xlu0 %v1123
  %v1125 = vpop.xlane.xlu0 %1124
  %v1126 = vrcp.pop %v1122
  %v1127 = vrcp.pop %v1125
  %v1128 = vmul.f32 %v1117, %v1126
  %v1129 = vmul.f32 %v1119, %v1127
  %1130 = vrot.lane.b32.xlu0 %v1066, 64
  %v1131 = vpop.permute.xlu0 %1130
  %1132 = vrot.lane.b32.xlu0 %v1069, 64
  %v1133 = vpop.permute.xlu0 %1132
  %v1136 = vsel %vm402, %v1128, 0
  %v1139 = vsel %vm402, %v1129, 0
  %v1141 = vsel %vm437, %v1133, 0
  %1143 = vmatpush.msra.mxu0 0.0
  %1144 = vmatpush.msra.mxu0 0.0
  %1145 = vmatpush.msra.mxu0 0.0
  %1146 = vmatpush.msra.mxu0 0.0
  %1147 = vmatpush.msra.mxu0 0.0
  %1148 = vmatpush.msra.mxu0 0.0
  %1149 = vmatpush.msra.mxu0 0.0
  %1150 = vmatpush.msra.mxu0 0.0
  %1151 = vmatpush.msra.mxu0 0.0
  %1152 = vmatpush.msra.mxu0 0.0
  %1153 = vmatpush.msra.mxu0 0.0
  %1154 = vmatpush.msra.mxu0 0.0
  %1155 = vmatpush.msra.mxu0 0.0
  %1156 = vmatpush.msra.mxu0 0.0
  %1157 = vmatpush.msra.mxu0 %v1141
  %1158 = vmatpush.msra.mxu0 %v1131
  %1159 = vmatmul.f32.gmra.mxu0 %v1136
  %v1160 = vpop.f32.mrf.mxu0
  %v1161 = vadd.f32 0.0, %v1160
  %1162 = vmatmul.f32.gmra.mxu0 %v1139
  %v1163 = vpop.f32.mrf.mxu0
  %v1164 = vadd.f32 0.0, %v1163
  %1165 = vdwg.mxu0
  %1166 = vrot.lane.b32.xlu0 %v1066, 120
  %v1167 = vpop.permute.xlu0 %1166
  %1168 = vrot.lane.b32.xlu0 %v1069, 120
  %v1169 = vpop.permute.xlu0 %1168
  %1170 = vrot.lane.b32.xlu0 %v1066, 88
  %v1171 = vpop.permute.xlu0 %1170
  %1172 = vrot.lane.b32.xlu0 %v1069, 88
  %v1173 = vpop.permute.xlu0 %1172
  %v1174 = vsel %vm370, %v1167, 0
  %v1176 = vsel %vm370, %v1169, 0
  %v1178 = vsel %vm370, %v1171, 0
  %v1180 = vsel %vm370, %v1173, 0
  %1182 = vmatpush.xpose.msra.mxu0 0.0
  %1183 = vmatpush.xpose.msra.mxu0 0.0
  %1184 = vmatpush.xpose.msra.mxu0 0.0
  %1185 = vmatpush.xpose.msra.mxu0 0.0
  %1186 = vmatpush.xpose.msra.mxu0 0.0
  %1187 = vmatpush.xpose.msra.mxu0 0.0
  %1188 = vmatpush.xpose.msra.mxu0 0.0
  %1189 = vmatpush.xpose.msra.mxu0 0.0
  %1190 = vmatpush.xpose.msra.mxu0 0.0
  %1191 = vmatpush.xpose.msra.mxu0 0.0
  %1192 = vmatpush.xpose.msra.mxu0 0.0
  %1193 = vmatpush.xpose.msra.mxu0 0.0
  %1194 = vmatpush.xpose.msra.mxu0 0.0
  %1195 = vmatpush.xpose.msra.mxu0 0.0
  %1196 = vmatpush.xpose.msra.mxu0 %v1180
  %1197 = vmatpush.xpose.msra.mxu0 %v1178
  %1198 = vmatmul.f32.gmra.mxu0 %v1174
  %v1199 = vpop.f32.mrf.mxu0
  %v1200 = vadd.f32 %v14, %v1199
  %1201 = vmatmul.f32.gmra.mxu0 %v1176
  %v1202 = vpop.f32.mrf.mxu0
  %v1203 = vadd.f32 %v15, %v1202
  %1204 = vdwg.mxu0
  %v1205 = vsel %vm402, %v1200, -inf
  %1206 = vmax.xlane.f32.xlu0 %v1205
  %v1207 = vpop.xlane.xlu0 %1206
  %v1208 = vsel %vm406, %v1203, -inf
  %1209 = vmax.xlane.f32.xlu0 %v1208
  %v1210 = vpop.xlane.xlu0 %1209
  %v1211 = vsub.f32 %v1200, %v1207
  %v1212 = vsub.f32 %v1203, %v1210
  %v1213 = vmul.f32 %v1211, 1.442695
  %v1214 = vpow.pop %v1213
  %v1215 = vmul.f32 %v1212, 1.442695
  %v1216 = vpow.pop %v1215
  %v1217 = vsel %vm402, %v1214, 0.0
  %1218 = vadd.xlane.f32.xlu0 %v1217
  %v1219 = vpop.xlane.xlu0 %1218
  %v1220 = vsel %vm406, %v1216, 0.0
  %1221 = vadd.xlane.f32.xlu0 %v1220
  %v1222 = vpop.xlane.xlu0 %1221
  %v1223 = vrcp.pop %v1219
  %v1224 = vrcp.pop %v1222
  %v1225 = vmul.f32 %v1214, %v1223
  %v1226 = vmul.f32 %v1216, %v1224
  %1227 = vrot.lane.b32.xlu0 %v1066, 56
  %v1228 = vpop.permute.xlu0 %1227
  %1229 = vrot.lane.b32.xlu0 %v1069, 56
  %v1230 = vpop.permute.xlu0 %1229
  %v1233 = vsel %vm402, %v1225, 0
  %v1236 = vsel %vm402, %v1226, 0
  %v1238 = vsel %vm437, %v1230, 0
  %1240 = vmatpush.msra.mxu0 0.0
  %1241 = vmatpush.msra.mxu0 0.0
  %1242 = vmatpush.msra.mxu0 0.0
  %1243 = vmatpush.msra.mxu0 0.0
  %1244 = vmatpush.msra.mxu0 0.0
  %1245 = vmatpush.msra.mxu0 0.0
  %1246 = vmatpush.msra.mxu0 0.0
  %1247 = vmatpush.msra.mxu0 0.0
  %1248 = vmatpush.msra.mxu0 0.0
  %1249 = vmatpush.msra.mxu0 0.0
  %1250 = vmatpush.msra.mxu0 0.0
  %1251 = vmatpush.msra.mxu0 0.0
  %1252 = vmatpush.msra.mxu0 0.0
  %1253 = vmatpush.msra.mxu0 0.0
  %1254 = vmatpush.msra.mxu0 %v1238
  %1255 = vmatpush.msra.mxu0 %v1228
  %1256 = vmatmul.f32.gmra.mxu0 %v1233
  %v1257 = vpop.f32.mrf.mxu0
  %v1258 = vadd.f32 0.0, %v1257
  %1259 = vmatmul.f32.gmra.mxu0 %v1236
  %v1260 = vpop.f32.mrf.mxu0
  %v1261 = vadd.f32 0.0, %v1260
  %1262 = vdwg.mxu0
  %1263 = vrot.lane.b32.xlu0 %v1066, 112
  %v1264 = vpop.permute.xlu0 %1263
  %1265 = vrot.lane.b32.xlu0 %v1069, 112
  %v1266 = vpop.permute.xlu0 %1265
  %1267 = vrot.lane.b32.xlu0 %v1066, 80
  %v1268 = vpop.permute.xlu0 %1267
  %1269 = vrot.lane.b32.xlu0 %v1069, 80
  %v1270 = vpop.permute.xlu0 %1269
  %v1271 = vsel %vm370, %v1264, 0
  %v1273 = vsel %vm370, %v1266, 0
  %v1275 = vsel %vm370, %v1268, 0
  %v1277 = vsel %vm370, %v1270, 0
  %1279 = vmatpush.xpose.msra.mxu0 0.0
  %1280 = vmatpush.xpose.msra.mxu0 0.0
  %1281 = vmatpush.xpose.msra.mxu0 0.0
  %1282 = vmatpush.xpose.msra.mxu0 0.0
  %1283 = vmatpush.xpose.msra.mxu0 0.0
  %1284 = vmatpush.xpose.msra.mxu0 0.0
  %1285 = vmatpush.xpose.msra.mxu0 0.0
  %1286 = vmatpush.xpose.msra.mxu0 0.0
  %1287 = vmatpush.xpose.msra.mxu0 0.0
  %1288 = vmatpush.xpose.msra.mxu0 0.0
  %1289 = vmatpush.xpose.msra.mxu0 0.0
  %1290 = vmatpush.xpose.msra.mxu0 0.0
  %1291 = vmatpush.xpose.msra.mxu0 0.0
  %1292 = vmatpush.xpose.msra.mxu0 0.0
  %1293 = vmatpush.xpose.msra.mxu0 %v1277
  %1294 = vmatpush.xpose.msra.mxu0 %v1275
  %1295 = vmatmul.f32.gmra.mxu0 %v1271
  %v1296 = vpop.f32.mrf.mxu0
  %v1297 = vadd.f32 %v14, %v1296
  %1298 = vmatmul.f32.gmra.mxu0 %v1273
  %v1299 = vpop.f32.mrf.mxu0
  %v1300 = vadd.f32 %v15, %v1299
  %1301 = vdwg.mxu0
  %v1302 = vsel %vm402, %v1297, -inf
  %1303 = vmax.xlane.f32.xlu0 %v1302
  %v1304 = vpop.xlane.xlu0 %1303
  %v1305 = vsel %vm406, %v1300, -inf
  %1306 = vmax.xlane.f32.xlu0 %v1305
  %v1307 = vpop.xlane.xlu0 %1306
  %v1308 = vsub.f32 %v1297, %v1304
  %v1309 = vsub.f32 %v1300, %v1307
  %v1310 = vmul.f32 %v1308, 1.442695
  %v1311 = vpow.pop %v1310
  %v1312 = vmul.f32 %v1309, 1.442695
  %v1313 = vpow.pop %v1312
  %v1314 = vsel %vm402, %v1311, 0.0
  %1315 = vadd.xlane.f32.xlu0 %v1314
  %v1316 = vpop.xlane.xlu0 %1315
  %v1317 = vsel %vm406, %v1313, 0.0
  %1318 = vadd.xlane.f32.xlu0 %v1317
  %v1319 = vpop.xlane.xlu0 %1318
  %v1320 = vrcp.pop %v1316
  %v1321 = vrcp.pop %v1319
  %v1322 = vmul.f32 %v1311, %v1320
  %v1323 = vmul.f32 %v1313, %v1321
  %1324 = vrot.lane.b32.xlu0 %v1066, 48
  %v1325 = vpop.permute.xlu0 %1324
  %1326 = vrot.lane.b32.xlu0 %v1069, 48
  %v1327 = vpop.permute.xlu0 %1326
  %v1330 = vsel %vm402, %v1322, 0
  %v1333 = vsel %vm402, %v1323, 0
  %v1335 = vsel %vm437, %v1327, 0
  %1337 = vmatpush.msra.mxu0 0.0
  %1338 = vmatpush.msra.mxu0 0.0
  %1339 = vmatpush.msra.mxu0 0.0
  %1340 = vmatpush.msra.mxu0 0.0
  %1341 = vmatpush.msra.mxu0 0.0
  %1342 = vmatpush.msra.mxu0 0.0
  %1343 = vmatpush.msra.mxu0 0.0
  %1344 = vmatpush.msra.mxu0 0.0
  %1345 = vmatpush.msra.mxu0 0.0
  %1346 = vmatpush.msra.mxu0 0.0
  %1347 = vmatpush.msra.mxu0 0.0
  %1348 = vmatpush.msra.mxu0 0.0
  %1349 = vmatpush.msra.mxu0 0.0
  %1350 = vmatpush.msra.mxu0 0.0
  %1351 = vmatpush.msra.mxu0 %v1335
  %1352 = vmatpush.msra.mxu0 %v1325
  %1353 = vmatmul.f32.gmra.mxu0 %v1330
  %v1354 = vpop.f32.mrf.mxu0
  %v1355 = vadd.f32 0.0, %v1354
  %1356 = vmatmul.f32.gmra.mxu0 %v1333
  %v1357 = vpop.f32.mrf.mxu0
  %v1358 = vadd.f32 0.0, %v1357
  %1359 = vdwg.mxu0
  %1360 = vrot.lane.b32.xlu0 %v1066, 104
  %v1361 = vpop.permute.xlu0 %1360
  %1362 = vrot.lane.b32.xlu0 %v1069, 104
  %v1363 = vpop.permute.xlu0 %1362
  %1364 = vrot.lane.b32.xlu0 %v1066, 72
  %v1365 = vpop.permute.xlu0 %1364
  %1366 = vrot.lane.b32.xlu0 %v1069, 72
  %v1367 = vpop.permute.xlu0 %1366
  %v1368 = vsel %vm370, %v1361, 0
  %v1370 = vsel %vm370, %v1363, 0
  %v1372 = vsel %vm370, %v1365, 0
  %v1374 = vsel %vm370, %v1367, 0
  %1376 = vmatpush.xpose.msra.mxu0 0.0
  %1377 = vmatpush.xpose.msra.mxu0 0.0
  %1378 = vmatpush.xpose.msra.mxu0 0.0
  %1379 = vmatpush.xpose.msra.mxu0 0.0
  %1380 = vmatpush.xpose.msra.mxu0 0.0
  %1381 = vmatpush.xpose.msra.mxu0 0.0
  %1382 = vmatpush.xpose.msra.mxu0 0.0
  %1383 = vmatpush.xpose.msra.mxu0 0.0
  %1384 = vmatpush.xpose.msra.mxu0 0.0
  %1385 = vmatpush.xpose.msra.mxu0 0.0
  %1386 = vmatpush.xpose.msra.mxu0 0.0
  %1387 = vmatpush.xpose.msra.mxu0 0.0
  %1388 = vmatpush.xpose.msra.mxu0 0.0
  %1389 = vmatpush.xpose.msra.mxu0 0.0
  %1390 = vmatpush.xpose.msra.mxu0 %v1374
  %1391 = vmatpush.xpose.msra.mxu0 %v1372
  %1392 = vmatmul.f32.gmra.mxu0 %v1368
  %v1393 = vpop.f32.mrf.mxu0
  %v1394 = vadd.f32 %v14, %v1393
  %1395 = vmatmul.f32.gmra.mxu0 %v1370
  %v1396 = vpop.f32.mrf.mxu0
  %v1397 = vadd.f32 %v15, %v1396
  %1398 = vdwg.mxu0
  %v1399 = vsel %vm402, %v1394, -inf
  %1400 = vmax.xlane.f32.xlu0 %v1399
  %v1401 = vpop.xlane.xlu0 %1400
  %v1402 = vsel %vm406, %v1397, -inf
  %1403 = vmax.xlane.f32.xlu0 %v1402
  %v1404 = vpop.xlane.xlu0 %1403
  %v1405 = vsub.f32 %v1394, %v1401
  %v1406 = vsub.f32 %v1397, %v1404
  %v1407 = vmul.f32 %v1405, 1.442695
  %v1408 = vpow.pop %v1407
  %v1409 = vmul.f32 %v1406, 1.442695
  %v1410 = vpow.pop %v1409
  %v1411 = vsel %vm402, %v1408, 0.0
  %1412 = vadd.xlane.f32.xlu0 %v1411
  %v1413 = vpop.xlane.xlu0 %1412
  %v1414 = vsel %vm406, %v1410, 0.0
  %1415 = vadd.xlane.f32.xlu0 %v1414
  %v1416 = vpop.xlane.xlu0 %1415
  %v1417 = vrcp.pop %v1413
  %v1418 = vrcp.pop %v1416
  %v1419 = vmul.f32 %v1408, %v1417
  %v1420 = vmul.f32 %v1410, %v1418
  %1421 = vrot.lane.b32.xlu0 %v1066, 40
  %v1422 = vpop.permute.xlu0 %1421
  %1423 = vrot.lane.b32.xlu0 %v1069, 40
  %v1424 = vpop.permute.xlu0 %1423
  %v1427 = vsel %vm402, %v1419, 0
  %v1430 = vsel %vm402, %v1420, 0
  %v1432 = vsel %vm437, %v1424, 0
  %1434 = vmatpush.msra.mxu0 0.0
  %1435 = vmatpush.msra.mxu0 0.0
  %1436 = vmatpush.msra.mxu0 0.0
  %1437 = vmatpush.msra.mxu0 0.0
  %1438 = vmatpush.msra.mxu0 0.0
  %1439 = vmatpush.msra.mxu0 0.0
  %1440 = vmatpush.msra.mxu0 0.0
  %1441 = vmatpush.msra.mxu0 0.0
  %1442 = vmatpush.msra.mxu0 0.0
  %1443 = vmatpush.msra.mxu0 0.0
  %1444 = vmatpush.msra.mxu0 0.0
  %1445 = vmatpush.msra.mxu0 0.0
  %1446 = vmatpush.msra.mxu0 0.0
  %1447 = vmatpush.msra.mxu0 0.0
  %1448 = vmatpush.msra.mxu0 %v1432
  %1449 = vmatpush.msra.mxu0 %v1422
  %1450 = vmatmul.f32.gmra.mxu0 %v1427
  %v1451 = vpop.f32.mrf.mxu0
  %v1452 = vadd.f32 0.0, %v1451
  %1453 = vmatmul.f32.gmra.mxu0 %v1430
  %v1454 = vpop.f32.mrf.mxu0
  %v1455 = vadd.f32 0.0, %v1454
  %1456 = vdwg.mxu0
  %1459 = vrot.lane.b32.xlu0 %v1258, 8
  %v1460 = vpop.permute.xlu0 %1459
  %1461 = vrot.lane.b32.xlu0 %v1261, 8
  %v1462 = vpop.permute.xlu0 %1461
  %1467 = vrot.lane.b32.xlu0 %v1355, 16
  %v1468 = vpop.permute.xlu0 %1467
  %1469 = vrot.lane.b32.xlu0 %v1358, 16
  %v1470 = vpop.permute.xlu0 %1469
  %1475 = vrot.lane.b32.xlu0 %v1452, 24
  %v1476 = vpop.permute.xlu0 %1475
  %1477 = vrot.lane.b32.xlu0 %v1455, 24
  %v1478 = vpop.permute.xlu0 %1477
  %v1481 = vsel %vm370, %v1161, %v1460
  %v1482 = vsel %vm370, %v1164, %v1462
  %v1483 = vsel %vm780, %v1481, %v1468
  %v1484 = vsel %vm780, %v1482, %v1470
  %v1485 = vsel %vm783, %v1483, %v1476
  %v1486 = vsel %vm783, %v1484, %v1478
  %v1487 = vld [vmem:[%s1 + $0x400] sm:$0xff]
  %v1488 = vld [vmem:[%s1 + $0x408] sm:$0xff]
  %v1489 = vld [vmem:[%s1 + $0x410] sm:$0xff]
  %v1490 = vld [vmem:[%s1 + $0x418] sm:$0xff]
  %v1492 = vsel %vm266, %v1485, 0
  %v1495 = vsel %vm266, %v1486, 0
  %1497 = vmatpush.msra.mxu0 0.0
  %1498 = vmatpush.msra.mxu0 0.0
  %1499 = vmatpush.msra.mxu0 0.0
  %1500 = vmatpush.msra.mxu0 0.0
  %1501 = vmatpush.msra.mxu0 0.0
  %1502 = vmatpush.msra.mxu0 0.0
  %1503 = vmatpush.msra.mxu0 0.0
  %1504 = vmatpush.msra.mxu0 0.0
  %1505 = vmatpush.msra.mxu0 0.0
  %1506 = vmatpush.msra.mxu0 0.0
  %1507 = vmatpush.msra.mxu0 0.0
  %1508 = vmatpush.msra.mxu0 0.0
  %1509 = vmatpush.msra.mxu0 %v1490
  %1510 = vmatpush.msra.mxu0 %v1489
  %1511 = vmatpush.msra.mxu0 %v1488
  %1512 = vmatpush.msra.mxu0 %v1487
  %1513 = vmatmul.f32.gmra.mxu0 %v1492
  %v1514 = vpop.f32.mrf.mxu0
  %v1515 = vadd.f32 0.0, %v1514
  %1516 = vmatmul.f32.gmra.mxu0 %v1495
  %v1517 = vpop.f32.mrf.mxu0
  %v1518 = vadd.f32 0.0, %v1517
  %1519 = vdwg.mxu0
  %v1520 = vadd.f32 %v977, %v1515
  %v1521 = vadd.f32 %v978, %v1518
  %v1522 = vld [vmem:[%s1 + $0x3fa] sm:$0x1]
  %v1523 = vperm.slane %v1522, 0
  %v1524 = vadd.f32 %v1520, %v1523
  %v1525 = vadd.f32 %v1521, %v1523
  %v1526 = vld [vmem:[%s1 + $0x3fb] sm:$0x1]
  %v1527 = vld [vmem:[%s1 + $0x3fc] sm:$0x1]
  %v1528 = vsel %vm266, %v1524, 0.0
  %1529 = vadd.xlane.f32.xlu0 %v1528
  %v1530 = vpop.xlane.xlu0 %1529
  %v1531 = vsel %vm270, %v1525, 0.0
  %1532 = vadd.xlane.f32.xlu0 %v1531
  %v1533 = vpop.xlane.xlu0 %1532
  %v1534 = vmul.f32 %v1530, %v280
  %v1535 = vmul.f32 %v1533, %v280
  %v1536 = vmul.f32 %v1524, %v1524
  %v1537 = vmul.f32 %v1525, %v1525
  %v1538 = vsel %vm266, %v1536, 0.0
  %1539 = vadd.xlane.f32.xlu0 %v1538
  %v1540 = vpop.xlane.xlu0 %1539
  %v1541 = vsel %vm270, %v1537, 0.0
  %1542 = vadd.xlane.f32.xlu0 %v1541
  %v1543 = vpop.xlane.xlu0 %1542
  %v1544 = vmul.f32 %v1540, %v280
  %v1545 = vmul.f32 %v1543, %v280
  %v1546 = vmul.f32 %v1534, %v1534
  %v1547 = vmul.f32 %v1535, %v1535
  %v1548 = vsub.f32 %v1544, %v1546
  %v1549 = vsub.f32 %v1545, %v1547
  %v1550 = vsub.f32 %v1524, %v1534
  %v1551 = vsub.f32 %v1525, %v1535
  %v1552 = vadd.f32 %v1548, 1e-06
  %v1553 = vadd.f32 %v1549, 1e-06
  %v1554 = vrsqrt.pop %v1552
  %v1555 = vmul.f32 %v1554, %v1552
  %v1556 = vmul.f32 %v1555, %v1554
  %v1557 = vmul.f32 0.5, %v1556
  %v1558 = vsub.f32 1.5, %v1557
  %v1559 = vmul.f32 %v1554, %v1558
  %vm1560 = vweird.f32 %v1552
  %vm1561 = vweird.f32 %v1554
  %vm1562 = vmor %vm1560, %vm1561
  %v1563 = vsel %vm1562, %v1554, %v1559
  %v1564 = vrsqrt.pop %v1553
  %v1565 = vmul.f32 %v1564, %v1553
  %v1566 = vmul.f32 %v1565, %v1564
  %v1567 = vmul.f32 0.5, %v1566
  %v1568 = vsub.f32 1.5, %v1567
  %v1569 = vmul.f32 %v1564, %v1568
  %vm1570 = vweird.f32 %v1553
  %vm1571 = vweird.f32 %v1564
  %vm1572 = vmor %vm1570, %vm1571
  %v1573 = vsel %vm1572, %v1564, %v1569
  %v1574 = vmul.f32 %v1550, %v1563
  %v1575 = vmul.f32 %v1551, %v1573
  %v1576 = vperm.slane %v1526, 0
  %v1577 = vmul.f32 %v1574, %v1576
  %v1578 = vmul.f32 %v1575, %v1576
  %v1579 = vperm.slane %v1527, 0
  %v1580 = vadd.f32 %v1577, %v1579
  %v1581 = vadd.f32 %v1578, %v1579
  %v1582 = vld [vmem:[%s1035 + $0x28] sm:$0xff]
  %v1583 = vld [vmem:[%s1035 + $0x30] sm:$0xff]
  %v1584 = vld [vmem:[%s1035 + $0x38] sm:$0xff]
  %v1585 = vld [vmem:[%s1035 + $0x40] sm:$0xff]
  %v1586 = vld [vmem:[%s1035 + $0x48] sm:$0x1]
  %v1587 = vperm.slane %v1586, 0
  %v1589 = vsel %vm266, %v1580, 0
  %v1592 = vsel %vm266, %v1581, 0
  %1594 = vmatpush.msra.mxu0 0.0
  %1595 = vmatpush.msra.mxu0 0.0
  %1596 = vmatpush.msra.mxu0 0.0
  %1597 = vmatpush.msra.mxu0 0.0
  %1598 = vmatpush.msra.mxu0 0.0
  %1599 = vmatpush.msra.mxu0 0.0
  %1600 = vmatpush.msra.mxu0 0.0
  %1601 = vmatpush.msra.mxu0 0.0
  %1602 = vmatpush.msra.mxu0 0.0
  %1603 = vmatpush.msra.mxu0 0.0
  %1604 = vmatpush.msra.mxu0 0.0
  %1605 = vmatpush.msra.mxu0 0.0
  %1606 = vmatpush.msra.mxu0 %v1585
  %1607 = vmatpush.msra.mxu0 %v1584
  %1608 = vmatpush.msra.mxu0 %v1583
  %1609 = vmatpush.msra.mxu0 %v1582
  %1610 = vmatmul.f32.gmra.mxu0 %v1589
  %v1611 = vpop.f32.mrf.mxu0
  %v1612 = vadd.f32 %v1587, %v1611
  %1613 = vmatmul.f32.gmra.mxu0 %v1592
  %v1614 = vpop.f32.mrf.mxu0
  %v1615 = vadd.f32 %v1587, %v1614
  %1616 = vdwg.mxu0
  %v1617 = vmul.f32 %v1612, %v1612
  %v1618 = vmul.f32 %v1615, %v1615
  %v1619 = vmul.f32 %v1612, %v1617
  %v1620 = vmul.f32 %v1615, %v1618
  %v1621 = vmul.f32 %v1619, 0.044715
  %v1622 = vmul.f32 %v1620, 0.044715
  %v1623 = vadd.f32 %v1612, %v1621
  %v1624 = vadd.f32 %v1615, %v1622
  %v1625 = vmul.f32 %v1623, 0.7978846
  %v1626 = vmul.f32 %v1624, 0.7978846
  %v1627 = vtanh.pop %v1625
  %v1628 = vtanh.pop %v1626
  %v1629 = vadd.f32 %v1627, 1.0
  %v1630 = vadd.f32 %v1628, 1.0
  %v1631 = vmul.f32 %v1629, 0.5
  %v1632 = vmul.f32 %v1630, 0.5
  %v1633 = vmul.f32 %v1612, %v1631
  %v1634 = vmul.f32 %v1615, %v1632
  %v1635 = vld [vmem:[%s1 + $0x420] sm:$0xff]
  %v1636 = vld [vmem:[%s1 + $0x428] sm:$0xff]
  %v1637 = vld [vmem:[%s1 + $0x430] sm:$0xff]
  %v1638 = vld [vmem:[%s1 + $0x438] sm:$0xff]
  %v1639 = vld [vmem:[%s1 + $0x440] sm:$0xff]
  %v1640 = vld [vmem:[%s1 + $0x448] sm:$0xff]
  %v1641 = vld [vmem:[%s1 + $0x450] sm:$0xff]
  %v1642 = vld [vmem:[%s1 + $0x458] sm:$0xff]
  %v1643 = vld [vmem:[%s1 + $0x460] sm:$0xff]
  %v1644 = vld [vmem:[%s1 + $0x468] sm:$0xff]
  %v1645 = vld [vmem:[%s1 + $0x470] sm:$0xff]
  %v1646 = vld [vmem:[%s1 + $0x478] sm:$0xff]
  %v1647 = vld [vmem:[%s1 + $0x480] sm:$0xff]
  %v1648 = vld [vmem:[%s1 + $0x488] sm:$0xff]
  %v1649 = vld [vmem:[%s1 + $0x490] sm:$0xff]
  %v1650 = vld [vmem:[%s1 + $0x498] sm:$0xff]
  %1651 = vmatpush.msra.mxu0 %v1650
  %1652 = vmatpush.msra.mxu0 %v1649
  %1653 = vmatpush.msra.mxu0 %v1648
  %1654 = vmatpush.msra.mxu0 %v1647
  %1655 = vmatpush.msra.mxu0 %v1646
  %1656 = vmatpush.msra.mxu0 %v1645
  %1657 = vmatpush.msra.mxu0 %v1644
  %1658 = vmatpush.msra.mxu0 %v1643
  %1659 = vmatpush.msra.mxu0 %v1642
  %1660 = vmatpush.msra.mxu0 %v1641
  %1661 = vmatpush.msra.mxu0 %v1640
  %1662 = vmatpush.msra.mxu0 %v1639
  %1663 = vmatpush.msra.mxu0 %v1638
  %1664 = vmatpush.msra.mxu0 %v1637
  %1665 = vmatpush.msra.mxu0 %v1636
  %1666 = vmatpush.msra.mxu0 %v1635
  %1667 = vmatmul.f32.gmra.mxu0 %v1633
  %v1668 = vpop.f32.mrf.mxu0
  %v1669 = vadd.f32 0.0, %v1668
  %1670 = vmatmul.f32.gmra.mxu0 %v1634
  %v1671 = vpop.f32.mrf.mxu0
  %v1672 = vadd.f32 0.0, %v1671
  %1673 = vdwg.mxu0
  %v1674 = vadd.f32 %v1524, %v1669
  %v1675 = vadd.f32 %v1525, %v1672
  %v1676 = vld [vmem:[%s1 + $0x3fd] sm:$0x1]
  %v1677 = vperm.slane %v1676, 0
  %v1678 = vadd.f32 %v1674, %v1677
  %v1679 = vadd.f32 %v1675, %v1677
  %v1680 = vld [vmem:[%s1 + $0x310] sm:$0x1]
  %v1681 = vld [vmem:[%s1 + $0x311] sm:$0x1]
  %v1682 = vsel %vm266, %v1678, 0.0
  %1683 = vadd.xlane.f32.xlu0 %v1682
  %v1684 = vpop.xlane.xlu0 %1683
  %v1685 = vsel %vm270, %v1679, 0.0
  %1686 = vadd.xlane.f32.xlu0 %v1685
  %v1687 = vpop.xlane.xlu0 %1686
  %v1688 = vmul.f32 %v1684, %v280
  %v1689 = vmul.f32 %v1687, %v280
  %v1690 = vmul.f32 %v1678, %v1678
  %v1691 = vmul.f32 %v1679, %v1679
  %v1692 = vsel %vm266, %v1690, 0.0
  %1693 = vadd.xlane.f32.xlu0 %v1692
  %v1694 = vpop.xlane.xlu0 %1693
  %v1695 = vsel %vm270, %v1691, 0.0
  %1696 = vadd.xlane.f32.xlu0 %v1695
  %v1697 = vpop.xlane.xlu0 %1696
  %v1698 = vmul.f32 %v1694, %v280
  %v1699 = vmul.f32 %v1697, %v280
  %v1700 = vmul.f32 %v1688, %v1688
  %v1701 = vmul.f32 %v1689, %v1689
  %v1702 = vsub.f32 %v1698, %v1700
  %v1703 = vsub.f32 %v1699, %v1701
  %v1704 = vsub.f32 %v1678, %v1688
  %v1705 = vsub.f32 %v1679, %v1689
  %v1706 = vadd.f32 %v1702, 1e-06
  %v1707 = vadd.f32 %v1703, 1e-06
  %v1708 = vrsqrt.pop %v1706
  %v1709 = vmul.f32 %v1708, %v1706
  %v1710 = vmul.f32 %v1709, %v1708
  %v1711 = vmul.f32 0.5, %v1710
  %v1712 = vsub.f32 1.5, %v1711
  %v1713 = vmul.f32 %v1708, %v1712
  %vm1714 = vweird.f32 %v1706
  %vm1715 = vweird.f32 %v1708
  %vm1716 = vmor %vm1714, %vm1715
  %v1717 = vsel %vm1716, %v1708, %v1713
  %v1718 = vrsqrt.pop %v1707
  %v1719 = vmul.f32 %v1718, %v1707
  %v1720 = vmul.f32 %v1719, %v1718
  %v1721 = vmul.f32 0.5, %v1720
  %v1722 = vsub.f32 1.5, %v1721
  %v1723 = vmul.f32 %v1718, %v1722
  %vm1724 = vweird.f32 %v1707
  %vm1725 = vweird.f32 %v1718
  %vm1726 = vmor %vm1724, %vm1725
  %v1727 = vsel %vm1726, %v1718, %v1723
  %v1728 = vmul.f32 %v1704, %v1717
  %v1729 = vmul.f32 %v1705, %v1727
  %v1730 = vperm.slane %v1680, 0
  %v1731 = vmul.f32 %v1728, %v1730
  %v1732 = vmul.f32 %v1729, %v1730
  %v1733 = vperm.slane %v1681, 0
  %v1734 = vadd.f32 %v1731, %v1733
  %v1735 = vadd.f32 %v1732, %v1733
  %v1736 = vld [vmem:[%s1 + $0x318] sm:$0xff]
  %v1737 = vld [vmem:[%s1 + $0x320] sm:$0xff]
  %v1738 = vld [vmem:[%s1 + $0x328] sm:$0xff]
  %v1739 = vld [vmem:[%s1 + $0x330] sm:$0xff]
  %v1740 = vld [vmem:[%s1 + $0x338] sm:$0x1]
  %v1741 = vperm.slane %v1740, 0
  %v1743 = vsel %vm266, %v1734, 0
  %v1746 = vsel %vm266, %v1735, 0
  %1748 = vmatpush.msra.mxu0 0.0
  %1749 = vmatpush.msra.mxu0 0.0
  %1750 = vmatpush.msra.mxu0 0.0
  %1751 = vmatpush.msra.mxu0 0.0
  %1752 = vmatpush.msra.mxu0 0.0
  %1753 = vmatpush.msra.mxu0 0.0
  %1754 = vmatpush.msra.mxu0 0.0
  %1755 = vmatpush.msra.mxu0 0.0
  %1756 = vmatpush.msra.mxu0 0.0
  %1757 = vmatpush.msra.mxu0 0.0
  %1758 = vmatpush.msra.mxu0 0.0
  %1759 = vmatpush.msra.mxu0 0.0
  %1760 = vmatpush.msra.mxu0 %v1739
  %1761 = vmatpush.msra.mxu0 %v1738
  %1762 = vmatpush.msra.mxu0 %v1737
  %1763 = vmatpush.msra.mxu0 %v1736
  %1764 = vmatmul.f32.gmra.mxu0 %v1743
  %v1765 = vpop.f32.mrf.mxu0
  %v1766 = vadd.f32 %v1741, %v1765
  %1767 = vmatmul.f32.gmra.mxu0 %v1746
  %v1768 = vpop.f32.mrf.mxu0
  %v1769 = vadd.f32 %v1741, %v1768
  %1770 = vdwg.mxu0
  %1773 = vrot.lane.b32.xlu0 %v1678, 32
  %v1774 = vpop.permute.xlu0 %1773
  %1775 = vrot.lane.b32.xlu0 %v1679, 32
  %v1776 = vpop.permute.xlu0 %1775
  %1779 = vrot.lane.b32.xlu0 %v1734, 64
  %v1780 = vpop.permute.xlu0 %1779
  %1781 = vrot.lane.b32.xlu0 %v1735, 64
  %v1782 = vpop.permute.xlu0 %1781
  %1787 = vrot.lane.b32.xlu0 %v1766, 96
  %v1788 = vpop.permute.xlu0 %1787
  %1789 = vrot.lane.b32.xlu0 %v1769, 96
  %v1790 = vpop.permute.xlu0 %1789
  %v1793 = vsel %vm266, %v977, %v1774
  %v1794 = vsel %vm266, %v978, %v1776
  %vm1795 = vcmask 523264
  %v1796 = vsel %vm1795, %v1793, %v1780
  %v1797 = vsel %vm1795, %v1794, %v1782
  %vm1798 = vcmask 785408
  %v1799 = vsel %vm1798, %v1796, %v1788
  %v1800 = vsel %vm1798, %v1797, %v1790
  %1801 = vst [vmem:[%s3] sm:$0xff] %v1799
  %1802 = vst [vmem:[%s3 + $0x8] sm:$0x3] %v1800
  // Predicated region
  $region14: #{vit_forward.1} parent=0 // pred_check
    _
  $region15: #{vit_forward.1} parent=0 // pred_check_branch
    %1804 = sbr.rel (0) target = $region17
  $region16: #{vit_forward.1} parent=0 // pred_region
    _
  $region17: #{vit_forward.1} parent=0 // pred_fallthru
    _
  // Predicated region
  $region18: #{vit_forward.1} parent=0 // pred_check
    _
  $region19: #{vit_forward.1} parent=0 // pred_check_branch
    %1806 = sbr.rel (0) target = $region21
  $region20: #{vit_forward.1} parent=0 // pred_region
    _
  $region21: #{vit_forward.1} parent=0 // pred_fallthru
    _

</llo_original>
